<compile_context>
chip_gen: v7x
topology: tpu7x:2x2x1
jax: 0.10.0
libtpu: 0.0.40
codegen_flags: <defaults>
</compile_context>

<pallas_src>
import functools

import jax
import jax.numpy as jnp
from jax.experimental import pallas as pl
from jax.experimental.pallas import tpu as pltpu

# ----------------------------- configuration -------------------------------
IMG_SIZE = (1, 32, 32)          # (C, H, W) -- must be (*, 32, 32) or (*, 64, 64)
LATENT_DIM = 8
N_SENS = 2
HIDDEN = 128                    # lane-dense hidden width
LANE = 128                      # TPU lane width
TILE_B = 8                      # batch tile (f32 sublane count); raise to 128+
                                # for throughput-oriented large-batch use
D_IN = IMG_SIZE[0] * IMG_SIZE[1] * IMG_SIZE[2]   # 1024
BATCH = 16

# PyTorch nn.Module defaults to training=True, so forward() goes through the
# reparameterization (sampling) branch.  eps is drawn deterministically in the
# wrapper from PRNGKey and passed into the kernel.


# ------------------------------- kernel ------------------------------------
def _vae_fwd_kernel(
    # per-tile inputs
    x_ref, eps_ref, keepm_ref, sampm_ref,
    # encoder params (bf16 weights, f32 biases)
    w1_ref, b1_ref, w2_ref, b2_ref, wh_ref, bh_ref,
    # decoder params
    wd1_ref, bd1_ref, wd2_ref, bd2_ref, wd3_ref, bd3_ref,
    # outputs
    recon_ref, stats_ref,
):
    f32 = jnp.float32
    bf16 = jnp.bfloat16

    x = x_ref[...]                                    # (TILE_B, D_IN) bf16

    # ---------------- encoder: MLP -> fused (mu | logvar) head --------------
    h = jnp.dot(x, w1_ref[...], preferred_element_type=f32) + b1_ref[...]
    h = jnp.maximum(h, 0.0).astype(bf16)
    h = jnp.dot(h, w2_ref[...], preferred_element_type=f32) + b2_ref[...]
    h = jnp.maximum(h, 0.0).astype(bf16)
    # fused head: (TILE_B, 2*LANE); mu in lanes [0:8) of chunk 0,
    # logvar in lanes [0:8) of chunk 1, all other lanes exactly zero.
    head = jnp.dot(h, wh_ref[...], preferred_element_type=f32) + bh_ref[...]
    mu_pad = head[:, :LANE]                            # (TILE_B, 128)
    lv_pad = head[:, LANE:]                            # (TILE_B, 128)

    # ---------------- reparameterize (training branch) ----------------------
    # lanes < N_SENS                  : keep mean
    # N_SENS < lane < LATENT_DIM      : mean + std * eps
    # lane == N_SENS and lane >= L    : exact zero (original-code quirk + pad)
    keep = keepm_ref[...]                              # (1, 128) f32 constants
    samp = sampm_ref[...]
    std = jnp.exp(0.5 * lv_pad)
    zb = mu_pad * (keep + samp) + std * eps_ref[...] * samp

    # ---------------- decoder: MLP -> sigmoid reconstruction ----------------
    d = jnp.dot(zb.astype(bf16), wd1_ref[...], preferred_element_type=f32)
    d = jnp.maximum(d + bd1_ref[...], 0.0).astype(bf16)
    d = jnp.dot(d, wd2_ref[...], preferred_element_type=f32) + bd2_ref[...]
    d = jnp.maximum(d, 0.0).astype(bf16)
    logits = jnp.dot(d, wd3_ref[...], preferred_element_type=f32) + bd3_ref[...]
    recon_ref[...] = jax.nn.sigmoid(logits)

    # packed, lane-dense stat slab: [mu_pad | logvar_pad | z_pad]
    stats_ref[:, 0:LANE] = mu_pad
    stats_ref[:, LANE:2 * LANE] = lv_pad
    stats_ref[:, 2 * LANE:3 * LANE] = zb


# ------------------------------- wrapper ------------------------------------
@jax.jit
def vae_forward(x_nchw, kp, eps):
    """Returns (reconstruct, (mu, logvar), latent_sample) like VAE.forward."""
    b = x_nchw.shape[0]
    b_pad = -(-b // TILE_B) * TILE_B

    x_flat = x_nchw.reshape(b, -1).astype(jnp.bfloat16)
    x_flat = jnp.pad(x_flat, ((0, b_pad - b), (0, 0)))
    eps_pad = jnp.zeros((b_pad, LANE), jnp.float32)
    eps_pad = eps_pad.at[:b, :LATENT_DIM].set(eps.astype(jnp.float32))

    const = lambda i: (0, 0)
    row = lambda i: (i, 0)

    recon_flat, stats = pl.pallas_call(
        _vae_fwd_kernel,
        out_shape=(
            jax.ShapeDtypeStruct((b_pad, D_IN), jnp.float32),      # recon (flat)
            jax.ShapeDtypeStruct((b_pad, 3 * LANE), jnp.float32),  # mu|logvar|z
        ),
        grid=(b_pad // TILE_B,),
        in_specs=[
            pl.BlockSpec((TILE_B, D_IN), row),        # x
            pl.BlockSpec((TILE_B, LANE), row),        # eps (lane-padded)
            pl.BlockSpec((1, LANE), const),           # keep mask
            pl.BlockSpec((1, LANE), const),           # sample mask
            pl.BlockSpec((D_IN, HIDDEN), const),      # w1
            pl.BlockSpec((1, HIDDEN), const),         # b1
            pl.BlockSpec((HIDDEN, HIDDEN), const),    # w2
            pl.BlockSpec((1, HIDDEN), const),         # b2
            pl.BlockSpec((HIDDEN, 2 * LANE), const),  # fused mu|logvar head W
            pl.BlockSpec((1, 2 * LANE), const),       # fused head bias
            pl.BlockSpec((LANE, HIDDEN), const),      # wd1 (latent-padded)
            pl.BlockSpec((1, HIDDEN), const),         # bd1
            pl.BlockSpec((HIDDEN, HIDDEN), const),    # wd2
            pl.BlockSpec((1, HIDDEN), const),         # bd2
            pl.BlockSpec((HIDDEN, D_IN), const),      # wd3
            pl.BlockSpec((1, D_IN), const),           # bd3
        ],
        out_specs=(
            pl.BlockSpec((TILE_B, D_IN), row),
            pl.BlockSpec((TILE_B, 3 * LANE), row),
        ),
        compiler_params=pltpu.CompilerParams(dimension_semantics=("parallel",)),
    )(
        x_flat, eps_pad, kp["keep_mask"], kp["samp_mask"],
        kp["w1"], kp["b1"], kp["w2"], kp["b2"], kp["w_head"], kp["b_head"],
        kp["wd1"], kp["bd1"], kp["wd2"], kp["bd2"], kp["wd3"], kp["bd3"],
    )

    recon = recon_flat[:b].reshape(b, *IMG_SIZE)
    mu = stats[:b, 0:LATENT_DIM]
    logvar = stats[:b, LANE:LANE + LATENT_DIM]
    z = stats[:b, 2 * LANE:2 * LANE + LATENT_DIM]
    return recon, (mu, logvar), z


# --------------------------- deterministic init ------------------------------
def init_params(key):
    """Logical (PyTorch-shaped) f32 parameters."""
    ks = jax.random.split(key, 8)
    scale = 0.05

    def lin(k, fan_in, fan_out):
        return scale * jax.random.normal(k, (fan_in, fan_out), jnp.float32)

    return {
        # encoder
        "w1": lin(ks[0], D_IN, HIDDEN), "b1": jnp.zeros((1, HIDDEN), jnp.float32),
        "w2": lin(ks[1], HIDDEN, HIDDEN), "b2": jnp.zeros((1, HIDDEN), jnp.float32),
        "wmu": lin(ks[2], HIDDEN, LATENT_DIM),
        "bmu": jnp.zeros((1, LATENT_DIM), jnp.float32),
        "wlv": lin(ks[3], HIDDEN, LATENT_DIM),
        "blv": jnp.zeros((1, LATENT_DIM), jnp.float32),
        # decoder
        "wd1": lin(ks[4], LATENT_DIM, HIDDEN), "bd1": jnp.zeros((1, HIDDEN), jnp.float32),
        "wd2": lin(ks[5], HIDDEN, HIDDEN), "bd2": jnp.zeros((1, HIDDEN), jnp.float32),
        "wd3": lin(ks[6], HIDDEN, D_IN), "bd3": jnp.zeros((1, D_IN), jnp.float32),
    }


def prepare_kernel_params(params):
    """Lane-padded / bf16 / head-fused parameter set consumed by the kernel."""
    bf16 = jnp.bfloat16
    L = LATENT_DIM

    w_head = jnp.zeros((HIDDEN, 2 * LANE), jnp.float32)
    w_head = w_head.at[:, :L].set(params["wmu"])
    w_head = w_head.at[:, LANE:LANE + L].set(params["wlv"])
    b_head = jnp.zeros((1, 2 * LANE), jnp.float32)
    b_head = b_head.at[:, :L].set(params["bmu"])
    b_head = b_head.at[:, LANE:LANE + L].set(params["blv"])

    wd1_pad = jnp.zeros((LANE, HIDDEN), jnp.float32).at[:L, :].set(params["wd1"])

    lat = jnp.arange(LANE)
    keep_mask = (lat < N_SENS).astype(jnp.float32)[None, :]
    samp_mask = ((lat >= N_SENS + 1) & (lat < L)).astype(jnp.float32)[None, :]

    return {
        "w1": params["w1"].astype(bf16), "b1": params["b1"],
        "w2": params["w2"].astype(bf16), "b2": params["b2"],
        "w_head": w_head.astype(bf16), "b_head": b_head,
        "wd1": wd1_pad.astype(bf16), "bd1": params["bd1"],
        "wd2": params["wd2"].astype(bf16), "bd2": params["bd2"],
        "wd3": params["wd3"].astype(bf16), "bd3": params["bd3"],
        "keep_mask": keep_mask, "samp_mask": samp_mask,
    }


# ------------------------------- reference -----------------------------------
def vae_forward_ref(x_nchw, params, eps, matmul_dtype=jnp.float32):
    """Pure-JAX reference mirroring the PyTorch forward (training mode).

    matmul_dtype=float32  -> faithful f32 PyTorch semantics.
    matmul_dtype=bfloat16 -> mirrors the kernel's bf16-matmul / f32-accumulate
                             numerics exactly (tight comparison).
    """
    b = x_nchw.shape[0]
    cast = lambda a: a.astype(matmul_dtype)

    def dense(a, w, bias):
        return jnp.dot(cast(a), cast(w), preferred_element_type=jnp.float32) + bias

    x = x_nchw.reshape(b, -1)
    h = jnp.maximum(dense(x, params["w1"], params["b1"]), 0.0)
    h = jnp.maximum(dense(h, params["w2"], params["b2"]), 0.0)
    mu = dense(h, params["wmu"], params["bmu"])
    logvar = dense(h, params["wlv"], params["blv"])

    std = jnp.exp(0.5 * logvar)
    z_full = mu + std * eps
    zb = jnp.zeros_like(mu)
    zb = zb.at[:, :N_SENS].set(mu[:, :N_SENS])
    zb = zb.at[:, N_SENS + 1:].set(z_full[:, N_SENS + 1:])

    d = jnp.maximum(dense(zb, params["wd1"], params["bd1"]), 0.0)
    d = jnp.maximum(dense(d, params["wd2"], params["bd2"]), 0.0)
    recon = jax.nn.sigmoid(dense(d, params["wd3"], params["bd3"]))
    return recon.reshape(b, *IMG_SIZE), (mu, logvar), zb


# --------------------------------- main --------------------------------------
if __name__ == "__main__":
    key = jax.random.PRNGKey(0)
    k_x, k_p, k_eps = jax.random.split(key, 3)

    x = jax.random.uniform(k_x, (BATCH, *IMG_SIZE), jnp.float32)
    params = init_params(k_p)
    kparams = prepare_kernel_params(params)
    eps = jax.random.normal(k_eps, (BATCH, LATENT_DIM), jnp.float32)

    recon, (mu, logvar), z = vae_forward(x, kparams, eps)
    jax.block_until_ready((recon, mu, logvar, z))

    # --- tight check vs. a reference using identical bf16-matmul numerics ---
    r_bf, (mu_bf, lv_bf), z_bf = vae_forward_ref(x, params, eps, jnp.bfloat16)
    assert recon.shape == (BATCH, *IMG_SIZE)
    assert mu.shape == (BATCH, LATENT_DIM) and logvar.shape == (BATCH, LATENT_DIM)
    assert z.shape == (BATCH, LATENT_DIM)
    assert jnp.allclose(recon, r_bf, atol=2e-3)
    assert jnp.allclose(mu, mu_bf, atol=2e-3)
    assert jnp.allclose(logvar, lv_bf, atol=2e-3)
    assert jnp.allclose(z, z_bf, atol=2e-3)

    # --- loose check vs. faithful f32 PyTorch semantics ---
    r_f32, (mu_f32, lv_f32), z_f32 = vae_forward_ref(x, params, eps, jnp.float32)
    assert jnp.allclose(recon, r_f32, atol=5e-2)
    assert jnp.allclose(mu, mu_f32, atol=5e-2)
    assert jnp.allclose(logvar, lv_f32, atol=5e-2)
    assert jnp.allclose(z, z_f32, atol=5e-2)

    # index n_sens of the latent sample must be exactly zero (original quirk)
    assert jnp.all(z[:, N_SENS] == 0.0)

    print("KERNEL_OK")
</pallas_src>

<mosaic_0001>
module attributes {stable_mosaic.version = 11 : i64} {
  func.func @_vae_fwd_kernel(%arg0: i32, %arg1: memref<8x1024xbf16, #tpu.memory_space<vmem>>, %arg2: memref<8x128xf32, #tpu.memory_space<vmem>>, %arg3: memref<1x128xf32, #tpu.memory_space<vmem>>, %arg4: memref<1x128xf32, #tpu.memory_space<vmem>>, %arg5: memref<1024x128xbf16, #tpu.memory_space<vmem>>, %arg6: memref<1x128xf32, #tpu.memory_space<vmem>>, %arg7: memref<128x128xbf16, #tpu.memory_space<vmem>>, %arg8: memref<1x128xf32, #tpu.memory_space<vmem>>, %arg9: memref<128x256xbf16, #tpu.memory_space<vmem>>, %arg10: memref<1x256xf32, #tpu.memory_space<vmem>>, %arg11: memref<128x128xbf16, #tpu.memory_space<vmem>>, %arg12: memref<1x128xf32, #tpu.memory_space<vmem>>, %arg13: memref<128x128xbf16, #tpu.memory_space<vmem>>, %arg14: memref<1x128xf32, #tpu.memory_space<vmem>>, %arg15: memref<128x1024xbf16, #tpu.memory_space<vmem>>, %arg16: memref<1x1024xf32, #tpu.memory_space<vmem>>, %arg17: memref<8x1024xf32, #tpu.memory_space<vmem>>, %arg18: memref<8x384xf32, #tpu.memory_space<vmem>>) attributes {dimension_semantics = [#tpu.dimension_semantics<parallel>], iteration_bounds = array<i64: 2>, scalar_prefetch = 0 : i64, scratch_operands = 0 : i64, tpu.core_type = #tpu.core_type<tc>, window_params = [{transform_indices = @transform_0, window_bounds = array<i64: 8, 1024>}, {transform_indices = @transform_1, window_bounds = array<i64: 8, 128>}, {pipeline_mode = #tpu.pipeline_mode<synchronous>, transform_indices = @transform_2, window_bounds = array<i64: 1, 128>}, {pipeline_mode = #tpu.pipeline_mode<synchronous>, transform_indices = @transform_3, window_bounds = array<i64: 1, 128>}, {pipeline_mode = #tpu.pipeline_mode<synchronous>, transform_indices = @transform_4, window_bounds = array<i64: 1024, 128>}, {pipeline_mode = #tpu.pipeline_mode<synchronous>, transform_indices = @transform_5, window_bounds = array<i64: 1, 128>}, {pipeline_mode = #tpu.pipeline_mode<synchronous>, transform_indices = @transform_6, window_bounds = array<i64: 128, 128>}, {pipeline_mode = #tpu.pipeline_mode<synchronous>, transform_indices = @transform_7, window_bounds = array<i64: 1, 128>}, {pipeline_mode = #tpu.pipeline_mode<synchronous>, transform_indices = @transform_8, window_bounds = array<i64: 128, 256>}, {pipeline_mode = #tpu.pipeline_mode<synchronous>, transform_indices = @transform_9, window_bounds = array<i64: 1, 256>}, {pipeline_mode = #tpu.pipeline_mode<synchronous>, transform_indices = @transform_10, window_bounds = array<i64: 128, 128>}, {pipeline_mode = #tpu.pipeline_mode<synchronous>, transform_indices = @transform_11, window_bounds = array<i64: 1, 128>}, {pipeline_mode = #tpu.pipeline_mode<synchronous>, transform_indices = @transform_12, window_bounds = array<i64: 128, 128>}, {pipeline_mode = #tpu.pipeline_mode<synchronous>, transform_indices = @transform_13, window_bounds = array<i64: 1, 128>}, {pipeline_mode = #tpu.pipeline_mode<synchronous>, transform_indices = @transform_14, window_bounds = array<i64: 128, 1024>}, {pipeline_mode = #tpu.pipeline_mode<synchronous>, transform_indices = @transform_15, window_bounds = array<i64: 1, 1024>}, {transform_indices = @transform_16, window_bounds = array<i64: 8, 1024>}, {transform_indices = @transform_17, window_bounds = array<i64: 8, 384>}]} {
    %c0 = arith.constant 0 : index
    %c0_0 = arith.constant 0 : index
    %0 = vector.load %arg1[%c0, %c0_0] : memref<8x1024xbf16, #tpu.memory_space<vmem>>, vector<8x1024xbf16>
    %c0_1 = arith.constant 0 : index
    %c0_2 = arith.constant 0 : index
    %1 = vector.load %arg5[%c0_1, %c0_2] : memref<1024x128xbf16, #tpu.memory_space<vmem>>, vector<1024x128xbf16>
    %cst = arith.constant dense<0.000000e+00> : vector<8x128xf32>
    %2 = tpu.matmul %0, %1, %cst {dimension_numbers = #tpu.dot_dimension_numbers<[1], [0], [0], [1], [0, 0, 1, 1], [], []>} : vector<8x1024xbf16>, vector<1024x128xbf16>, vector<8x128xf32> -> vector<8x128xf32>
    %c0_3 = arith.constant 0 : index
    %c0_4 = arith.constant 0 : index
    %3 = vector.load %arg6[%c0_3, %c0_4] : memref<1x128xf32, #tpu.memory_space<vmem>>, vector<1x128xf32>
    %4 = vector.broadcast %3 : vector<1x128xf32> to vector<8x128xf32>
    %5 = arith.addf %2, %4 : vector<8x128xf32>
    %cst_5 = arith.constant 0.000000e+00 : f32
    %6 = vector.broadcast %cst_5 : f32 to vector<8x128xf32>
    %7 = arith.maximumf %5, %6 : vector<8x128xf32>
    %8 = arith.truncf %7 : vector<8x128xf32> to vector<8x128xbf16>
    %c0_6 = arith.constant 0 : index
    %c0_7 = arith.constant 0 : index
    %9 = vector.load %arg7[%c0_6, %c0_7] : memref<128x128xbf16, #tpu.memory_space<vmem>>, vector<128x128xbf16>
    %cst_8 = arith.constant dense<0.000000e+00> : vector<8x128xf32>
    %10 = tpu.matmul %8, %9, %cst_8 {dimension_numbers = #tpu.dot_dimension_numbers<[1], [0], [0], [1], [0, 0, 1, 1], [], []>} : vector<8x128xbf16>, vector<128x128xbf16>, vector<8x128xf32> -> vector<8x128xf32>
    %c0_9 = arith.constant 0 : index
    %c0_10 = arith.constant 0 : index
    %11 = vector.load %arg8[%c0_9, %c0_10] : memref<1x128xf32, #tpu.memory_space<vmem>>, vector<1x128xf32>
    %12 = vector.broadcast %11 : vector<1x128xf32> to vector<8x128xf32>
    %13 = arith.addf %10, %12 : vector<8x128xf32>
    %cst_11 = arith.constant 0.000000e+00 : f32
    %14 = vector.broadcast %cst_11 : f32 to vector<8x128xf32>
    %15 = arith.maximumf %13, %14 : vector<8x128xf32>
    %16 = arith.truncf %15 : vector<8x128xf32> to vector<8x128xbf16>
    %c0_12 = arith.constant 0 : index
    %c0_13 = arith.constant 0 : index
    %17 = vector.load %arg9[%c0_12, %c0_13] : memref<128x256xbf16, #tpu.memory_space<vmem>>, vector<128x256xbf16>
    %cst_14 = arith.constant dense<0.000000e+00> : vector<8x256xf32>
    %18 = tpu.matmul %16, %17, %cst_14 {dimension_numbers = #tpu.dot_dimension_numbers<[1], [0], [0], [1], [0, 0, 1, 1], [], []>} : vector<8x128xbf16>, vector<128x256xbf16>, vector<8x256xf32> -> vector<8x256xf32>
    %c0_15 = arith.constant 0 : index
    %c0_16 = arith.constant 0 : index
    %19 = vector.load %arg10[%c0_15, %c0_16] : memref<1x256xf32, #tpu.memory_space<vmem>>, vector<1x256xf32>
    %20 = vector.broadcast %19 : vector<1x256xf32> to vector<8x256xf32>
    %21 = arith.addf %18, %20 : vector<8x256xf32>
    %22 = vector.extract_strided_slice %21 {offsets = [0, 0], sizes = [8, 128], strides = [1, 1]} : vector<8x256xf32> to vector<8x128xf32>
    %23 = vector.extract_strided_slice %21 {offsets = [0, 128], sizes = [8, 128], strides = [1, 1]} : vector<8x256xf32> to vector<8x128xf32>
    %c0_17 = arith.constant 0 : index
    %c0_18 = arith.constant 0 : index
    %24 = vector.load %arg3[%c0_17, %c0_18] : memref<1x128xf32, #tpu.memory_space<vmem>>, vector<1x128xf32>
    %c0_19 = arith.constant 0 : index
    %c0_20 = arith.constant 0 : index
    %25 = vector.load %arg4[%c0_19, %c0_20] : memref<1x128xf32, #tpu.memory_space<vmem>>, vector<1x128xf32>
    %cst_21 = arith.constant 5.000000e-01 : f32
    %26 = vector.broadcast %cst_21 : f32 to vector<8x128xf32>
    %27 = arith.mulf %26, %23 : vector<8x128xf32>
    %28 = math.exp %27 : vector<8x128xf32>
    %29 = arith.addf %24, %25 : vector<1x128xf32>
    %30 = vector.broadcast %29 : vector<1x128xf32> to vector<8x128xf32>
    %31 = arith.mulf %22, %30 : vector<8x128xf32>
    %c0_22 = arith.constant 0 : index
    %c0_23 = arith.constant 0 : index
    %32 = vector.load %arg2[%c0_22, %c0_23] : memref<8x128xf32, #tpu.memory_space<vmem>>, vector<8x128xf32>
    %33 = arith.mulf %28, %32 : vector<8x128xf32>
    %34 = vector.broadcast %25 : vector<1x128xf32> to vector<8x128xf32>
    %35 = arith.mulf %33, %34 : vector<8x128xf32>
    %36 = arith.addf %31, %35 : vector<8x128xf32>
    %37 = arith.truncf %36 : vector<8x128xf32> to vector<8x128xbf16>
    %c0_24 = arith.constant 0 : index
    %c0_25 = arith.constant 0 : index
    %38 = vector.load %arg11[%c0_24, %c0_25] : memref<128x128xbf16, #tpu.memory_space<vmem>>, vector<128x128xbf16>
    %cst_26 = arith.constant dense<0.000000e+00> : vector<8x128xf32>
    %39 = tpu.matmul %37, %38, %cst_26 {dimension_numbers = #tpu.dot_dimension_numbers<[1], [0], [0], [1], [0, 0, 1, 1], [], []>} : vector<8x128xbf16>, vector<128x128xbf16>, vector<8x128xf32> -> vector<8x128xf32>
    %c0_27 = arith.constant 0 : index
    %c0_28 = arith.constant 0 : index
    %40 = vector.load %arg12[%c0_27, %c0_28] : memref<1x128xf32, #tpu.memory_space<vmem>>, vector<1x128xf32>
    %41 = vector.broadcast %40 : vector<1x128xf32> to vector<8x128xf32>
    %42 = arith.addf %39, %41 : vector<8x128xf32>
    %cst_29 = arith.constant 0.000000e+00 : f32
    %43 = vector.broadcast %cst_29 : f32 to vector<8x128xf32>
    %44 = arith.maximumf %42, %43 : vector<8x128xf32>
    %45 = arith.truncf %44 : vector<8x128xf32> to vector<8x128xbf16>
    %c0_30 = arith.constant 0 : index
    %c0_31 = arith.constant 0 : index
    %46 = vector.load %arg13[%c0_30, %c0_31] : memref<128x128xbf16, #tpu.memory_space<vmem>>, vector<128x128xbf16>
    %cst_32 = arith.constant dense<0.000000e+00> : vector<8x128xf32>
    %47 = tpu.matmul %45, %46, %cst_32 {dimension_numbers = #tpu.dot_dimension_numbers<[1], [0], [0], [1], [0, 0, 1, 1], [], []>} : vector<8x128xbf16>, vector<128x128xbf16>, vector<8x128xf32> -> vector<8x128xf32>
    %c0_33 = arith.constant 0 : index
    %c0_34 = arith.constant 0 : index
    %48 = vector.load %arg14[%c0_33, %c0_34] : memref<1x128xf32, #tpu.memory_space<vmem>>, vector<1x128xf32>
    %49 = vector.broadcast %48 : vector<1x128xf32> to vector<8x128xf32>
    %50 = arith.addf %47, %49 : vector<8x128xf32>
    %cst_35 = arith.constant 0.000000e+00 : f32
    %51 = vector.broadcast %cst_35 : f32 to vector<8x128xf32>
    %52 = arith.maximumf %50, %51 : vector<8x128xf32>
    %53 = arith.truncf %52 : vector<8x128xf32> to vector<8x128xbf16>
    %c0_36 = arith.constant 0 : index
    %c0_37 = arith.constant 0 : index
    %54 = vector.load %arg15[%c0_36, %c0_37] : memref<128x1024xbf16, #tpu.memory_space<vmem>>, vector<128x1024xbf16>
    %cst_38 = arith.constant dense<0.000000e+00> : vector<8x1024xf32>
    %55 = tpu.matmul %53, %54, %cst_38 {dimension_numbers = #tpu.dot_dimension_numbers<[1], [0], [0], [1], [0, 0, 1, 1], [], []>} : vector<8x128xbf16>, vector<128x1024xbf16>, vector<8x1024xf32> -> vector<8x1024xf32>
    %c0_39 = arith.constant 0 : index
    %c0_40 = arith.constant 0 : index
    %56 = vector.load %arg16[%c0_39, %c0_40] : memref<1x1024xf32, #tpu.memory_space<vmem>>, vector<1x1024xf32>
    %57 = vector.broadcast %56 : vector<1x1024xf32> to vector<8x1024xf32>
    %58 = arith.addf %55, %57 : vector<8x1024xf32>
    %59 = arith.negf %58 : vector<8x1024xf32>
    %60 = math.exp %59 : vector<8x1024xf32>
    %cst_41 = arith.constant 1.000000e+00 : f32
    %61 = vector.broadcast %cst_41 : f32 to vector<8x1024xf32>
    %62 = arith.addf %61, %60 : vector<8x1024xf32>
    %63 = arith.divf %61, %62 : vector<8x1024xf32>
    %c0_42 = arith.constant 0 : index
    %c0_43 = arith.constant 0 : index
    %64 = vector.load %arg17[%c0_42, %c0_43] : memref<8x1024xf32, #tpu.memory_space<vmem>>, vector<8x1024xf32>
    tpu.vector_store %arg17[%c0_42, %c0_43], %63 {strides = array<i32>} : memref<8x1024xf32, #tpu.memory_space<vmem>>, vector<8x1024xf32>,
    %c0_44 = arith.constant 0 : index
    %c0_45 = arith.constant 0 : index
    %65 = vector.load %arg18[%c0_44, %c0_45] : memref<8x384xf32, #tpu.memory_space<vmem>>, vector<8x128xf32>
    tpu.vector_store %arg18[%c0_44, %c0_45], %22 {strides = array<i32>} : memref<8x384xf32, #tpu.memory_space<vmem>>, vector<8x128xf32>,
    %c0_46 = arith.constant 0 : index
    %c128 = arith.constant 128 : index
    %66 = vector.load %arg18[%c0_46, %c128] : memref<8x384xf32, #tpu.memory_space<vmem>>, vector<8x128xf32>
    tpu.vector_store %arg18[%c0_46, %c128], %23 {strides = array<i32>} : memref<8x384xf32, #tpu.memory_space<vmem>>, vector<8x128xf32>,
    %c0_47 = arith.constant 0 : index
    %c256 = arith.constant 256 : index
    %67 = vector.load %arg18[%c0_47, %c256] : memref<8x384xf32, #tpu.memory_space<vmem>>, vector<8x128xf32>
    tpu.vector_store %arg18[%c0_47, %c256], %36 {strides = array<i32>} : memref<8x384xf32, #tpu.memory_space<vmem>>, vector<8x128xf32>,
    return
  }
  func.func @transform_0(%arg0: i32) -> (i32, i32) {
    %c0_i32 = arith.constant 0 : i32
    %c0_i32_0 = arith.constant 0 : i32
    return %arg0, %c0_i32 : i32, i32
  }
  func.func @transform_1(%arg0: i32) -> (i32, i32) {
    %c0_i32 = arith.constant 0 : i32
    %c0_i32_0 = arith.constant 0 : i32
    return %arg0, %c0_i32 : i32, i32
  }
  func.func @transform_2(%arg0: i32) -> (i32, i32) {
    %c0_i32 = arith.constant 0 : i32
    %c0_i32_0 = arith.constant 0 : i32
    %c0_i32_1 = arith.constant 0 : i32
    return %c0_i32, %c0_i32_0 : i32, i32
  }
  func.func @transform_3(%arg0: i32) -> (i32, i32) {
    %c0_i32 = arith.constant 0 : i32
    %c0_i32_0 = arith.constant 0 : i32
    %c0_i32_1 = arith.constant 0 : i32
    return %c0_i32, %c0_i32_0 : i32, i32
  }
  func.func @transform_4(%arg0: i32) -> (i32, i32) {
    %c0_i32 = arith.constant 0 : i32
    %c0_i32_0 = arith.constant 0 : i32
    %c0_i32_1 = arith.constant 0 : i32
    return %c0_i32, %c0_i32_0 : i32, i32
  }
  func.func @transform_5(%arg0: i32) -> (i32, i32) {
    %c0_i32 = arith.constant 0 : i32
    %c0_i32_0 = arith.constant 0 : i32
    %c0_i32_1 = arith.constant 0 : i32
    return %c0_i32, %c0_i32_0 : i32, i32
  }
  func.func @transform_6(%arg0: i32) -> (i32, i32) {
    %c0_i32 = arith.constant 0 : i32
    %c0_i32_0 = arith.constant 0 : i32
    %c0_i32_1 = arith.constant 0 : i32
    return %c0_i32, %c0_i32_0 : i32, i32
  }
  func.func @transform_7(%arg0: i32) -> (i32, i32) {
    %c0_i32 = arith.constant 0 : i32
    %c0_i32_0 = arith.constant 0 : i32
    %c0_i32_1 = arith.constant 0 : i32
    return %c0_i32, %c0_i32_0 : i32, i32
  }
  func.func @transform_8(%arg0: i32) -> (i32, i32) {
    %c0_i32 = arith.constant 0 : i32
    %c0_i32_0 = arith.constant 0 : i32
    %c0_i32_1 = arith.constant 0 : i32
    return %c0_i32, %c0_i32_0 : i32, i32
  }
  func.func @transform_9(%arg0: i32) -> (i32, i32) {
    %c0_i32 = arith.constant 0 : i32
    %c0_i32_0 = arith.constant 0 : i32
    %c0_i32_1 = arith.constant 0 : i32
    return %c0_i32, %c0_i32_0 : i32, i32
  }
  func.func @transform_10(%arg0: i32) -> (i32, i32) {
    %c0_i32 = arith.constant 0 : i32
    %c0_i32_0 = arith.constant 0 : i32
    %c0_i32_1 = arith.constant 0 : i32
    return %c0_i32, %c0_i32_0 : i32, i32
  }
  func.func @transform_11(%arg0: i32) -> (i32, i32) {
    %c0_i32 = arith.constant 0 : i32
    %c0_i32_0 = arith.constant 0 : i32
    %c0_i32_1 = arith.constant 0 : i32
    return %c0_i32, %c0_i32_0 : i32, i32
  }
  func.func @transform_12(%arg0: i32) -> (i32, i32) {
    %c0_i32 = arith.constant 0 : i32
    %c0_i32_0 = arith.constant 0 : i32
    %c0_i32_1 = arith.constant 0 : i32
    return %c0_i32, %c0_i32_0 : i32, i32
  }
  func.func @transform_13(%arg0: i32) -> (i32, i32) {
    %c0_i32 = arith.constant 0 : i32
    %c0_i32_0 = arith.constant 0 : i32
    %c0_i32_1 = arith.constant 0 : i32
    return %c0_i32, %c0_i32_0 : i32, i32
  }
  func.func @transform_14(%arg0: i32) -> (i32, i32) {
    %c0_i32 = arith.constant 0 : i32
    %c0_i32_0 = arith.constant 0 : i32
    %c0_i32_1 = arith.constant 0 : i32
    return %c0_i32, %c0_i32_0 : i32, i32
  }
  func.func @transform_15(%arg0: i32) -> (i32, i32) {
    %c0_i32 = arith.constant 0 : i32
    %c0_i32_0 = arith.constant 0 : i32
    %c0_i32_1 = arith.constant 0 : i32
    return %c0_i32, %c0_i32_0 : i32, i32
  }
  func.func @transform_16(%arg0: i32) -> (i32, i32) {
    %c0_i32 = arith.constant 0 : i32
    %c0_i32_0 = arith.constant 0 : i32
    return %arg0, %c0_i32 : i32, i32
  }
  func.func @transform_17(%arg0: i32) -> (i32, i32) {
    %c0_i32 = arith.constant 0 : i32
    %c0_i32_0 = arith.constant 0 : i32
    return %arg0, %c0_i32 : i32, i32
  }
}

</mosaic_0001>

<llo_original>
// kernel: vae_forward.1
$region0: #{vae_forward.1}
  #allocation0 [shape = 'u32[]', space=smem, size = 0x4, offset = 0x4, fixed_abs, tag = 'smem constant byte address 0x4 - core index']
  #allocation1 [shape = 'u32[144,128]{1,0:T(1,128)}', space=vmem, size = 0x12000, scoped, tag = 'internal scratch']
  %s0 = inlined_call_operand.vmem [shape: bf16[16,1024], index: 0, kind: input, shape index: {}]
  %s1 = inlined_call_operand.vmem [shape: f32[16,128], index: 1, kind: input, shape index: {}]
  %s2 = inlined_call_operand.vmem [shape: f32[1,128], index: 2, kind: input, shape index: {}]
  %s3 = inlined_call_operand.hbm [shape: f32[1,128], index: 3, kind: input, shape index: {}]
  %s4 = inlined_call_operand.vmem [shape: bf16[1024,128], index: 4, kind: input, shape index: {}]
  %s5 = inlined_call_operand.hbm [shape: f32[1,128], index: 5, kind: input, shape index: {}]
  %s6 = inlined_call_operand.hbm [shape: bf16[128,128], index: 6, kind: input, shape index: {}]
  %s7 = inlined_call_operand.hbm [shape: f32[1,128], index: 7, kind: input, shape index: {}]
  %s8 = inlined_call_operand.vmem [shape: bf16[128,256], index: 8, kind: input, shape index: {}]
  %s9 = inlined_call_operand.vmem [shape: f32[1,256], index: 9, kind: input, shape index: {}]
  %s10 = inlined_call_operand.vmem [shape: bf16[128,128], index: 10, kind: input, shape index: {}]
  %s11 = inlined_call_operand.hbm [shape: f32[1,128], index: 11, kind: input, shape index: {}]
  %s12 = inlined_call_operand.hbm [shape: bf16[128,128], index: 12, kind: input, shape index: {}]
  %s13 = inlined_call_operand.hbm [shape: f32[1,128], index: 13, kind: input, shape index: {}]
  %s14 = inlined_call_operand.vmem [shape: bf16[128,1024], index: 14, kind: input, shape index: {}]
  %s15 = inlined_call_operand.hbm [shape: f32[1,1024], index: 15, kind: input, shape index: {}]
  %s16 = inlined_call_operand.vmem [shape: f32[16,1024], index: 16, kind: output, shape index: {0}]
  %s17 = inlined_call_operand.vmem [shape: f32[16,384], index: 17, kind: output, shape index: {1}]
  %18 = xla_tuple %s16, %s17
  %s19 = sld [smem:[#allocation0]]
  $region137: #{vae_forward.1} parent=0
    _
  %s21 = ssub.s32 1, %s19
  %s22 = scalar_select 0, %s21, %s19
  $region1: #{vae_forward.1} parent=0
    #allocation2 [shape = 'u8[512]{0}', space=vmem, size = 0x400, scoped, tag = 'input window, operand 3, single buffered']
    #allocation3 [shape = 's32[2]{0}', space=sflag, size = 0x8, scoped, tag = 'scoped memory for vae_forward.1']
    #allocation4 [shape = 'u8[512]{0}', space=vmem, size = 0x400, scoped, tag = 'input window, operand 5, single buffered']
    #allocation5 [shape = 's32[1]{0}', space=sflag, size = 0x4, scoped, tag = 'scoped memory for vae_forward.1']
    #allocation6 [shape = 'u8[32768]{0}', space=vmem, size = 0x8000, scoped, tag = 'input window, operand 6, single buffered']
    #allocation7 [shape = 'u8[512]{0}', space=vmem, size = 0x400, scoped, tag = 'input window, operand 7, single buffered']
    #allocation8 [shape = 's32[1]{0}', space=sflag, size = 0x4, scoped, tag = 'scoped memory for vae_forward.1']
    #allocation9 [shape = 'u8[512]{0}', space=vmem, size = 0x400, scoped, tag = 'input window, operand 11, single buffered']
    #allocation10 [shape = 'u8[32768]{0}', space=vmem, size = 0x8000, scoped, tag = 'input window, operand 12, single buffered']
    #allocation11 [shape = 's32[1]{0}', space=sflag, size = 0x4, scoped, tag = 'scoped memory for vae_forward.1']
    #allocation12 [shape = 'u8[512]{0}', space=vmem, size = 0x400, scoped, tag = 'input window, operand 13, single buffered']
    #allocation13 [shape = 'u8[4096]{0}', space=vmem, size = 0x1000, scoped, tag = 'input window, operand 15, single buffered']
    #allocation14 [shape = 's32[1]{0}', space=sflag, size = 0x4, scoped, tag = 'scoped memory for vae_forward.1']
    %23 = vsyncpa [#allocation3], 0
    %24 = vsyncpa [#allocation5], 0
    %25 = vsyncpa [#allocation8], 0
    %26 = vsyncpa [#allocation11], 0
    %27 = vsyncpa [#allocation14], 0
    loop: start=0, step=1, limit=4
    $region2: #{vae_forward.1} parent=1 // loop_pre_header
      _
    $region3: #{vae_forward.1} parent=1 // loop_header
      %s29 = sphi 0, %s33
      %p30 = scmp.ge.s32.totalorder %s29, 4
      %s39 = sphi 0, %s41
      %s42 = sphi 0, %s39
      %s43 = sphi 0, %s42
      %s59 = sphi 0, %s43
      %s65 = sphi 0, %s67
      %s68 = sphi 0, %s65
      %s69 = sphi 0, %s68
      %s85 = sphi 0, %s69
      %s89 = sphi 0, %s89
      %s91 = sphi 0, %s89
      %s92 = sphi 0, %s91
      %s106 = sphi 0, %s92
      %s110 = sphi 0, %s110
      %s112 = sphi 0, %s110
      %s113 = sphi 0, %s112
      %s127 = sphi 0, %s113
      %s131 = sphi 0, %s131
      %s133 = sphi 0, %s131
      %s134 = sphi 0, %s133
      %s148 = sphi 0, %s134
      %s152 = sphi 0, %s152
      %s154 = sphi 0, %s152
      %s155 = sphi 0, %s154
      %s169 = sphi 0, %s155
      %s173 = sphi 0, %s173
      %s175 = sphi 0, %s173
      %s176 = sphi 0, %s175
      %s190 = sphi 0, %s176
      %s194 = sphi 0, %s194
      %s196 = sphi 0, %s194
      %s197 = sphi 0, %s196
      %s211 = sphi 0, %s197
      %s215 = sphi 0, %s215
      %s217 = sphi 0, %s215
      %s218 = sphi 0, %s217
      %s232 = sphi 0, %s218
      %s236 = sphi 0, %s236
      %s238 = sphi 0, %s236
      %s239 = sphi 0, %s238
      %s253 = sphi 0, %s239
      %s257 = sphi 0, %s257
      %s259 = sphi 0, %s257
      %s260 = sphi 0, %s259
      %s274 = sphi 0, %s260
      %s278 = sphi 0, %s278
      %s280 = sphi 0, %s278
      %s281 = sphi 0, %s280
      %s295 = sphi 0, %s281
      %s299 = sphi 0, %s299
      %s301 = sphi 0, %s299
      %s302 = sphi 0, %s301
      %s316 = sphi 0, %s302
      %s320 = sphi 0, %s320
      %s322 = sphi 0, %s320
      %s323 = sphi 0, %s322
      %s337 = sphi 0, %s323
      %s341 = sphi 0, %s341
      %s343 = sphi 0, %s341
      %s344 = sphi 0, %s343
      %s358 = sphi 0, %s344
      %s362 = sphi 0, %s362
      %s364 = sphi 0, %s362
      %s365 = sphi 0, %s364
      %s379 = sphi 0, %s365
      %s385 = sphi 0, %s387
      %s388 = sphi 0, %s385
      %s389 = sphi 0, %s388
      %s405 = sphi 0, %s389
      %s411 = sphi 0, %s413
      %s414 = sphi 0, %s411
      %s415 = sphi 0, %s414
      %s431 = sphi 0, %s415
    $region4: #{vae_forward.1} parent=1 // loop_header_branch
      %32 = sbr.rel (%p30) target = $region8
    $region5: #{vae_forward.1} parent=1 // loop_body
      %s34 = ssub.s32 %s29, 1
      %s35 = ssub.s32 %s29, 2
      %s36 = sadd.s32 %s29, 1
      %s37 = ssub.s32 %s29, %s36
      %p38 = scmp.eq.s32.totalorder %s37, 0
      %s40 = sadd.s32 %s39, 1
      %s41 = scalar_select %p38, %s39, %s40
      %p44 = pneg %p38
      %p45 = scmp.eq.s32.totalorder %s29, 1
      %p46 = por %p44, %p45
      %p47 = scmp.ne.s32.totalorder %s39, %s42
      %p48 = scmp.eq.s32.totalorder %s29, 0
      %p49 = por %p47, %p48
      %p50 = scmp.ne.s32.totalorder %s39, %s42
      %p51 = scmp.eq.s32.totalorder %s34, 1
      %p52 = por %p50, %p51
      %p53 = scmp.ne.s32.totalorder %s42, %s43
      %p54 = scmp.eq.s32.totalorder %s34, 0
      %p55 = por %p53, %p54
      %p56 = scmp.ne.s32.totalorder %s42, %s43
      %p57 = scmp.eq.s32.totalorder %s35, 1
      %p58 = por %p56, %p57
      %p60 = scmp.ne.s32.totalorder %s43, %s59
      %p61 = scmp.eq.s32.totalorder %s35, 0
      %p62 = por %p60, %p61
      %s63 = ssub.s32 %s29, %s36
      %p64 = scmp.eq.s32.totalorder %s63, 0
      %s66 = sadd.s32 %s65, 1
      %s67 = scalar_select %p64, %s65, %s66
      %p70 = pneg %p64
      %p71 = scmp.eq.s32.totalorder %s29, 1
      %p72 = por %p70, %p71
      %p73 = scmp.ne.s32.totalorder %s65, %s68
      %p74 = scmp.eq.s32.totalorder %s29, 0
      %p75 = por %p73, %p74
      %p76 = scmp.ne.s32.totalorder %s65, %s68
      %p77 = scmp.eq.s32.totalorder %s34, 1
      %p78 = por %p76, %p77
      %p79 = scmp.ne.s32.totalorder %s68, %s69
      %p80 = scmp.eq.s32.totalorder %s34, 0
      %p81 = por %p79, %p80
      %p82 = scmp.ne.s32.totalorder %s68, %s69
      %p83 = scmp.eq.s32.totalorder %s35, 1
      %p84 = por %p82, %p83
      %p86 = scmp.ne.s32.totalorder %s69, %s85
      %p87 = scmp.eq.s32.totalorder %s35, 0
      %p88 = por %p86, %p87
      %s90 = sadd.s32 %s89, 1
      %p93 = scmp.eq.s32.totalorder %s29, 1
      %p94 = scmp.ne.s32.totalorder %s89, %s91
      %p95 = scmp.eq.s32.totalorder %s29, 0
      %p96 = por %p94, %p95
      %p97 = scmp.ne.s32.totalorder %s89, %s91
      %p98 = scmp.eq.s32.totalorder %s34, 1
      %p99 = por %p97, %p98
      %p100 = scmp.ne.s32.totalorder %s91, %s92
      %p101 = scmp.eq.s32.totalorder %s34, 0
      %p102 = por %p100, %p101
      %p103 = scmp.ne.s32.totalorder %s91, %s92
      %p104 = scmp.eq.s32.totalorder %s35, 1
      %p105 = por %p103, %p104
      %p107 = scmp.ne.s32.totalorder %s92, %s106
      %p108 = scmp.eq.s32.totalorder %s35, 0
      %p109 = por %p107, %p108
      %s111 = sadd.s32 %s110, 1
      %p114 = scmp.eq.s32.totalorder %s29, 1
      %p115 = scmp.ne.s32.totalorder %s110, %s112
      %p116 = scmp.eq.s32.totalorder %s29, 0
      %p117 = por %p115, %p116
      %p118 = scmp.ne.s32.totalorder %s110, %s112
      %p119 = scmp.eq.s32.totalorder %s34, 1
      %p120 = por %p118, %p119
      %p121 = scmp.ne.s32.totalorder %s112, %s113
      %p122 = scmp.eq.s32.totalorder %s34, 0
      %p123 = por %p121, %p122
      %p124 = scmp.ne.s32.totalorder %s112, %s113
      %p125 = scmp.eq.s32.totalorder %s35, 1
      %p126 = por %p124, %p125
      %p128 = scmp.ne.s32.totalorder %s113, %s127
      %p129 = scmp.eq.s32.totalorder %s35, 0
      %p130 = por %p128, %p129
      %s132 = sadd.s32 %s131, 1
      %p135 = scmp.eq.s32.totalorder %s29, 1
      %p136 = scmp.ne.s32.totalorder %s131, %s133
      %p137 = scmp.eq.s32.totalorder %s29, 0
      %p138 = por %p136, %p137
      %p139 = scmp.ne.s32.totalorder %s131, %s133
      %p140 = scmp.eq.s32.totalorder %s34, 1
      %p141 = por %p139, %p140
      %p142 = scmp.ne.s32.totalorder %s133, %s134
      %p143 = scmp.eq.s32.totalorder %s34, 0
      %p144 = por %p142, %p143
      %p145 = scmp.ne.s32.totalorder %s133, %s134
      %p146 = scmp.eq.s32.totalorder %s35, 1
      %p147 = por %p145, %p146
      %p149 = scmp.ne.s32.totalorder %s134, %s148
      %p150 = scmp.eq.s32.totalorder %s35, 0
      %p151 = por %p149, %p150
      %s153 = sadd.s32 %s152, 1
      %p156 = scmp.eq.s32.totalorder %s29, 1
      %p157 = scmp.ne.s32.totalorder %s152, %s154
      %p158 = scmp.eq.s32.totalorder %s29, 0
      %p159 = por %p157, %p158
      %p160 = scmp.ne.s32.totalorder %s152, %s154
      %p161 = scmp.eq.s32.totalorder %s34, 1
      %p162 = por %p160, %p161
      %p163 = scmp.ne.s32.totalorder %s154, %s155
      %p164 = scmp.eq.s32.totalorder %s34, 0
      %p165 = por %p163, %p164
      %p166 = scmp.ne.s32.totalorder %s154, %s155
      %p167 = scmp.eq.s32.totalorder %s35, 1
      %p168 = por %p166, %p167
      %p170 = scmp.ne.s32.totalorder %s155, %s169
      %p171 = scmp.eq.s32.totalorder %s35, 0
      %p172 = por %p170, %p171
      %s174 = sadd.s32 %s173, 1
      %p177 = scmp.eq.s32.totalorder %s29, 1
      %p178 = scmp.ne.s32.totalorder %s173, %s175
      %p179 = scmp.eq.s32.totalorder %s29, 0
      %p180 = por %p178, %p179
      %p181 = scmp.ne.s32.totalorder %s173, %s175
      %p182 = scmp.eq.s32.totalorder %s34, 1
      %p183 = por %p181, %p182
      %p184 = scmp.ne.s32.totalorder %s175, %s176
      %p185 = scmp.eq.s32.totalorder %s34, 0
      %p186 = por %p184, %p185
      %p187 = scmp.ne.s32.totalorder %s175, %s176
      %p188 = scmp.eq.s32.totalorder %s35, 1
      %p189 = por %p187, %p188
      %p191 = scmp.ne.s32.totalorder %s176, %s190
      %p192 = scmp.eq.s32.totalorder %s35, 0
      %p193 = por %p191, %p192
      %s195 = sadd.s32 %s194, 1
      %p198 = scmp.eq.s32.totalorder %s29, 1
      %p199 = scmp.ne.s32.totalorder %s194, %s196
      %p200 = scmp.eq.s32.totalorder %s29, 0
      %p201 = por %p199, %p200
      %p202 = scmp.ne.s32.totalorder %s194, %s196
      %p203 = scmp.eq.s32.totalorder %s34, 1
      %p204 = por %p202, %p203
      %p205 = scmp.ne.s32.totalorder %s196, %s197
      %p206 = scmp.eq.s32.totalorder %s34, 0
      %p207 = por %p205, %p206
      %p208 = scmp.ne.s32.totalorder %s196, %s197
      %p209 = scmp.eq.s32.totalorder %s35, 1
      %p210 = por %p208, %p209
      %p212 = scmp.ne.s32.totalorder %s197, %s211
      %p213 = scmp.eq.s32.totalorder %s35, 0
      %p214 = por %p212, %p213
      %s216 = sadd.s32 %s215, 1
      %p219 = scmp.eq.s32.totalorder %s29, 1
      %p220 = scmp.ne.s32.totalorder %s215, %s217
      %p221 = scmp.eq.s32.totalorder %s29, 0
      %p222 = por %p220, %p221
      %p223 = scmp.ne.s32.totalorder %s215, %s217
      %p224 = scmp.eq.s32.totalorder %s34, 1
      %p225 = por %p223, %p224
      %p226 = scmp.ne.s32.totalorder %s217, %s218
      %p227 = scmp.eq.s32.totalorder %s34, 0
      %p228 = por %p226, %p227
      %p229 = scmp.ne.s32.totalorder %s217, %s218
      %p230 = scmp.eq.s32.totalorder %s35, 1
      %p231 = por %p229, %p230
      %p233 = scmp.ne.s32.totalorder %s218, %s232
      %p234 = scmp.eq.s32.totalorder %s35, 0
      %p235 = por %p233, %p234
      %s237 = sadd.s32 %s236, 1
      %p240 = scmp.eq.s32.totalorder %s29, 1
      %p241 = scmp.ne.s32.totalorder %s236, %s238
      %p242 = scmp.eq.s32.totalorder %s29, 0
      %p243 = por %p241, %p242
      %p244 = scmp.ne.s32.totalorder %s236, %s238
      %p245 = scmp.eq.s32.totalorder %s34, 1
      %p246 = por %p244, %p245
      %p247 = scmp.ne.s32.totalorder %s238, %s239
      %p248 = scmp.eq.s32.totalorder %s34, 0
      %p249 = por %p247, %p248
      %p250 = scmp.ne.s32.totalorder %s238, %s239
      %p251 = scmp.eq.s32.totalorder %s35, 1
      %p252 = por %p250, %p251
      %p254 = scmp.ne.s32.totalorder %s239, %s253
      %p255 = scmp.eq.s32.totalorder %s35, 0
      %p256 = por %p254, %p255
      %s258 = sadd.s32 %s257, 1
      %p261 = scmp.eq.s32.totalorder %s29, 1
      %p262 = scmp.ne.s32.totalorder %s257, %s259
      %p263 = scmp.eq.s32.totalorder %s29, 0
      %p264 = por %p262, %p263
      %p265 = scmp.ne.s32.totalorder %s257, %s259
      %p266 = scmp.eq.s32.totalorder %s34, 1
      %p267 = por %p265, %p266
      %p268 = scmp.ne.s32.totalorder %s259, %s260
      %p269 = scmp.eq.s32.totalorder %s34, 0
      %p270 = por %p268, %p269
      %p271 = scmp.ne.s32.totalorder %s259, %s260
      %p272 = scmp.eq.s32.totalorder %s35, 1
      %p273 = por %p271, %p272
      %p275 = scmp.ne.s32.totalorder %s260, %s274
      %p276 = scmp.eq.s32.totalorder %s35, 0
      %p277 = por %p275, %p276
      %s279 = sadd.s32 %s278, 1
      %p282 = scmp.eq.s32.totalorder %s29, 1
      %p283 = scmp.ne.s32.totalorder %s278, %s280
      %p284 = scmp.eq.s32.totalorder %s29, 0
      %p285 = por %p283, %p284
      %p286 = scmp.ne.s32.totalorder %s278, %s280
      %p287 = scmp.eq.s32.totalorder %s34, 1
      %p288 = por %p286, %p287
      %p289 = scmp.ne.s32.totalorder %s280, %s281
      %p290 = scmp.eq.s32.totalorder %s34, 0
      %p291 = por %p289, %p290
      %p292 = scmp.ne.s32.totalorder %s280, %s281
      %p293 = scmp.eq.s32.totalorder %s35, 1
      %p294 = por %p292, %p293
      %p296 = scmp.ne.s32.totalorder %s281, %s295
      %p297 = scmp.eq.s32.totalorder %s35, 0
      %p298 = por %p296, %p297
      %s300 = sadd.s32 %s299, 1
      %p303 = scmp.eq.s32.totalorder %s29, 1
      %p304 = scmp.ne.s32.totalorder %s299, %s301
      %p305 = scmp.eq.s32.totalorder %s29, 0
      %p306 = por %p304, %p305
      %p307 = scmp.ne.s32.totalorder %s299, %s301
      %p308 = scmp.eq.s32.totalorder %s34, 1
      %p309 = por %p307, %p308
      %p310 = scmp.ne.s32.totalorder %s301, %s302
      %p311 = scmp.eq.s32.totalorder %s34, 0
      %p312 = por %p310, %p311
      %p313 = scmp.ne.s32.totalorder %s301, %s302
      %p314 = scmp.eq.s32.totalorder %s35, 1
      %p315 = por %p313, %p314
      %p317 = scmp.ne.s32.totalorder %s302, %s316
      %p318 = scmp.eq.s32.totalorder %s35, 0
      %p319 = por %p317, %p318
      %s321 = sadd.s32 %s320, 1
      %p324 = scmp.eq.s32.totalorder %s29, 1
      %p325 = scmp.ne.s32.totalorder %s320, %s322
      %p326 = scmp.eq.s32.totalorder %s29, 0
      %p327 = por %p325, %p326
      %p328 = scmp.ne.s32.totalorder %s320, %s322
      %p329 = scmp.eq.s32.totalorder %s34, 1
      %p330 = por %p328, %p329
      %p331 = scmp.ne.s32.totalorder %s322, %s323
      %p332 = scmp.eq.s32.totalorder %s34, 0
      %p333 = por %p331, %p332
      %p334 = scmp.ne.s32.totalorder %s322, %s323
      %p335 = scmp.eq.s32.totalorder %s35, 1
      %p336 = por %p334, %p335
      %p338 = scmp.ne.s32.totalorder %s323, %s337
      %p339 = scmp.eq.s32.totalorder %s35, 0
      %p340 = por %p338, %p339
      %s342 = sadd.s32 %s341, 1
      %p345 = scmp.eq.s32.totalorder %s29, 1
      %p346 = scmp.ne.s32.totalorder %s341, %s343
      %p347 = scmp.eq.s32.totalorder %s29, 0
      %p348 = por %p346, %p347
      %p349 = scmp.ne.s32.totalorder %s341, %s343
      %p350 = scmp.eq.s32.totalorder %s34, 1
      %p351 = por %p349, %p350
      %p352 = scmp.ne.s32.totalorder %s343, %s344
      %p353 = scmp.eq.s32.totalorder %s34, 0
      %p354 = por %p352, %p353
      %p355 = scmp.ne.s32.totalorder %s343, %s344
      %p356 = scmp.eq.s32.totalorder %s35, 1
      %p357 = por %p355, %p356
      %p359 = scmp.ne.s32.totalorder %s344, %s358
      %p360 = scmp.eq.s32.totalorder %s35, 0
      %p361 = por %p359, %p360
      %s363 = sadd.s32 %s362, 1
      %p366 = scmp.eq.s32.totalorder %s29, 1
      %p367 = scmp.ne.s32.totalorder %s362, %s364
      %p368 = scmp.eq.s32.totalorder %s29, 0
      %p369 = por %p367, %p368
      %p370 = scmp.ne.s32.totalorder %s362, %s364
      %p371 = scmp.eq.s32.totalorder %s34, 1
      %p372 = por %p370, %p371
      %p373 = scmp.ne.s32.totalorder %s364, %s365
      %p374 = scmp.eq.s32.totalorder %s34, 0
      %p375 = por %p373, %p374
      %p376 = scmp.ne.s32.totalorder %s364, %s365
      %p377 = scmp.eq.s32.totalorder %s35, 1
      %p378 = por %p376, %p377
      %p380 = scmp.ne.s32.totalorder %s365, %s379
      %p381 = scmp.eq.s32.totalorder %s35, 0
      %p382 = por %p380, %p381
      %s383 = ssub.s32 %s29, %s36
      %p384 = scmp.eq.s32.totalorder %s383, 0
      %s386 = sadd.s32 %s385, 1
      %s387 = scalar_select %p384, %s385, %s386
      %p390 = pneg %p384
      %p391 = scmp.eq.s32.totalorder %s29, 1
      %p392 = por %p390, %p391
      %p393 = scmp.ne.s32.totalorder %s385, %s388
      %p394 = scmp.eq.s32.totalorder %s29, 0
      %p395 = por %p393, %p394
      %p396 = scmp.ne.s32.totalorder %s385, %s388
      %p397 = scmp.eq.s32.totalorder %s34, 1
      %p398 = por %p396, %p397
      %p399 = scmp.ne.s32.totalorder %s388, %s389
      %p400 = scmp.eq.s32.totalorder %s34, 0
      %p401 = por %p399, %p400
      %p402 = scmp.ne.s32.totalorder %s388, %s389
      %p403 = scmp.eq.s32.totalorder %s35, 1
      %p404 = por %p402, %p403
      %p406 = scmp.ne.s32.totalorder %s389, %s405
      %p407 = scmp.eq.s32.totalorder %s35, 0
      %p408 = por %p406, %p407
      %s409 = ssub.s32 %s29, %s36
      %p410 = scmp.eq.s32.totalorder %s409, 0
      %s412 = sadd.s32 %s411, 1
      %s413 = scalar_select %p410, %s411, %s412
      %p416 = pneg %p410
      %p417 = scmp.eq.s32.totalorder %s29, 1
      %p418 = por %p416, %p417
      %p419 = scmp.ne.s32.totalorder %s411, %s414
      %p420 = scmp.eq.s32.totalorder %s29, 0
      %p421 = por %p419, %p420
      %p422 = scmp.ne.s32.totalorder %s411, %s414
      %p423 = scmp.eq.s32.totalorder %s34, 1
      %p424 = por %p422, %p423
      %p425 = scmp.ne.s32.totalorder %s414, %s415
      %p426 = scmp.eq.s32.totalorder %s34, 0
      %p427 = por %p425, %p426
      %p428 = scmp.ne.s32.totalorder %s414, %s415
      %p429 = scmp.eq.s32.totalorder %s35, 1
      %p430 = por %p428, %p429
      %p432 = scmp.ne.s32.totalorder %s415, %s431
      %p433 = scmp.eq.s32.totalorder %s35, 0
      %p434 = por %p432, %p433
      %p435 = scmp.le.s32.totalorder 1, %s29
      %p436 = scmp.lt.s32.totalorder %s29, 3
      %p437 = pnand %p435, %p436
      %p438 = pneg %p437
      // Predicated region
      $region9: #{vae_forward.1} parent=5 // pred_check
        _
      $region10: #{vae_forward.1} parent=5 // pred_check_branch
        %440 = sbr.rel (%p437) target = $region12
      $region11: #{vae_forward.1} parent=5 // pred_region
        %s441 = ssub.s32 %s29, 1
        // Predicated region
        $region13: #{vae_forward.1} parent=11 // pred_check
          %p442 = pneg %p102
        $region14: #{vae_forward.1} parent=11 // pred_check_branch
          %444 = sbr.rel (%p442) target = $region16
        $region15: #{vae_forward.1} parent=11 // pred_region
          _
        $region16: #{vae_forward.1} parent=11 // pred_fallthru
          _
        // Predicated region
        $region17: #{vae_forward.1} parent=11 // pred_check
          %p445 = pneg %p123
        $region18: #{vae_forward.1} parent=11 // pred_check_branch
          %447 = sbr.rel (%p445) target = $region20
        $region19: #{vae_forward.1} parent=11 // pred_region
          %s449 = ssub.s32 16, 16
          %450 = vsyncadd [#allocation3], %s449
          %s452 = sshll.u32 [#allocation2], 4
          %s453 = int_to_ptr.vmem [resolvable:$true] %s452
          %455 = dma.hbm_to_vmem [thread:$0]  %s3, 16, %s453, [#allocation3]
        $region20: #{vae_forward.1} parent=11 // pred_fallthru
          _
        // Predicated region
        $region21: #{vae_forward.1} parent=11 // pred_check
          %p456 = pneg %p144
        $region22: #{vae_forward.1} parent=11 // pred_check_branch
          %458 = sbr.rel (%p456) target = $region24
        $region23: #{vae_forward.1} parent=11 // pred_region
          _
        $region24: #{vae_forward.1} parent=11 // pred_fallthru
          _
        // Predicated region
        $region25: #{vae_forward.1} parent=11 // pred_check
          %p459 = pneg %p165
        $region26: #{vae_forward.1} parent=11 // pred_check_branch
          %461 = sbr.rel (%p459) target = $region28
        $region27: #{vae_forward.1} parent=11 // pred_region
          %s463 = ssub.s32 16, 16
          %464 = vsyncadd [#allocation5], %s463
          %s466 = sshll.u32 [#allocation4], 4
          %s467 = int_to_ptr.vmem [resolvable:$true] %s466
          %469 = dma.hbm_to_vmem [thread:$0]  %s5, 16, %s467, [#allocation5]
        $region28: #{vae_forward.1} parent=11 // pred_fallthru
          _
        // Predicated region
        $region29: #{vae_forward.1} parent=11 // pred_check
          %p470 = pneg %p186
        $region30: #{vae_forward.1} parent=11 // pred_check_branch
          %472 = sbr.rel (%p470) target = $region32
        $region31: #{vae_forward.1} parent=11 // pred_region
          %s474 = ssub.s32 1024, 1024
          %475 = vsyncadd [#allocation5], %s474
          %s476 = sshll.u32 [#allocation6], 4
          %s477 = int_to_ptr.vmem [resolvable:$true] %s476
          %482 = dma.hbm_to_vmem [thread:$0]  %s6, 1024, %s477, [#allocation5], 64, 64, 4
        $region32: #{vae_forward.1} parent=11 // pred_fallthru
          _
        // Predicated region
        $region33: #{vae_forward.1} parent=11 // pred_check
          %p483 = pneg %p207
        $region34: #{vae_forward.1} parent=11 // pred_check_branch
          %485 = sbr.rel (%p483) target = $region36
        $region35: #{vae_forward.1} parent=11 // pred_region
          %s487 = ssub.s32 16, 16
          %488 = vsyncadd [#allocation8], %s487
          %s490 = sshll.u32 [#allocation7], 4
          %s491 = int_to_ptr.vmem [resolvable:$true] %s490
          %493 = dma.hbm_to_vmem [thread:$0]  %s7, 16, %s491, [#allocation8]
        $region36: #{vae_forward.1} parent=11 // pred_fallthru
          _
        // Predicated region
        $region37: #{vae_forward.1} parent=11 // pred_check
          %p494 = pneg %p228
        $region38: #{vae_forward.1} parent=11 // pred_check_branch
          %496 = sbr.rel (%p494) target = $region40
        $region39: #{vae_forward.1} parent=11 // pred_region
          _
        $region40: #{vae_forward.1} parent=11 // pred_fallthru
          _
        // Predicated region
        $region41: #{vae_forward.1} parent=11 // pred_check
          %p497 = pneg %p249
        $region42: #{vae_forward.1} parent=11 // pred_check_branch
          %499 = sbr.rel (%p497) target = $region44
        $region43: #{vae_forward.1} parent=11 // pred_region
          _
        $region44: #{vae_forward.1} parent=11 // pred_fallthru
          _
        // Predicated region
        $region45: #{vae_forward.1} parent=11 // pred_check
          %p500 = pneg %p270
        $region46: #{vae_forward.1} parent=11 // pred_check_branch
          %502 = sbr.rel (%p500) target = $region48
        $region47: #{vae_forward.1} parent=11 // pred_region
          _
        $region48: #{vae_forward.1} parent=11 // pred_fallthru
          _
        // Predicated region
        $region49: #{vae_forward.1} parent=11 // pred_check
          %p503 = pneg %p291
        $region50: #{vae_forward.1} parent=11 // pred_check_branch
          %505 = sbr.rel (%p503) target = $region52
        $region51: #{vae_forward.1} parent=11 // pred_region
          %s507 = ssub.s32 16, 16
          %508 = vsyncadd [#allocation8], %s507
          %s510 = sshll.u32 [#allocation9], 4
          %s511 = int_to_ptr.vmem [resolvable:$true] %s510
          %513 = dma.hbm_to_vmem [thread:$0]  %s11, 16, %s511, [#allocation8]
        $region52: #{vae_forward.1} parent=11 // pred_fallthru
          _
        // Predicated region
        $region53: #{vae_forward.1} parent=11 // pred_check
          %p514 = pneg %p312
        $region54: #{vae_forward.1} parent=11 // pred_check_branch
          %516 = sbr.rel (%p514) target = $region56
        $region55: #{vae_forward.1} parent=11 // pred_region
          %s518 = ssub.s32 1024, 1024
          %519 = vsyncadd [#allocation11], %s518
          %s520 = sshll.u32 [#allocation10], 4
          %s521 = int_to_ptr.vmem [resolvable:$true] %s520
          %526 = dma.hbm_to_vmem [thread:$0]  %s12, 1024, %s521, [#allocation11], 64, 64, 4
        $region56: #{vae_forward.1} parent=11 // pred_fallthru
          _
        // Predicated region
        $region57: #{vae_forward.1} parent=11 // pred_check
          %p527 = pneg %p333
        $region58: #{vae_forward.1} parent=11 // pred_check_branch
          %529 = sbr.rel (%p527) target = $region60
        $region59: #{vae_forward.1} parent=11 // pred_region
          %s531 = ssub.s32 16, 16
          %532 = vsyncadd [#allocation11], %s531
          %s534 = sshll.u32 [#allocation12], 4
          %s535 = int_to_ptr.vmem [resolvable:$true] %s534
          %537 = dma.hbm_to_vmem [thread:$0]  %s13, 16, %s535, [#allocation11]
        $region60: #{vae_forward.1} parent=11 // pred_fallthru
          _
        // Predicated region
        $region61: #{vae_forward.1} parent=11 // pred_check
          %p538 = pneg %p354
        $region62: #{vae_forward.1} parent=11 // pred_check_branch
          %540 = sbr.rel (%p538) target = $region64
        $region63: #{vae_forward.1} parent=11 // pred_region
          _
        $region64: #{vae_forward.1} parent=11 // pred_fallthru
          _
        // Predicated region
        $region65: #{vae_forward.1} parent=11 // pred_check
          %p541 = pneg %p375
        $region66: #{vae_forward.1} parent=11 // pred_check_branch
          %543 = sbr.rel (%p541) target = $region68
        $region67: #{vae_forward.1} parent=11 // pred_region
          %s545 = ssub.s32 128, 128
          %546 = vsyncadd [#allocation14], %s545
          %s548 = sshll.u32 [#allocation13], 4
          %s549 = int_to_ptr.vmem [resolvable:$true] %s548
          %551 = dma.hbm_to_vmem [thread:$0]  %s15, 128, %s549, [#allocation14]
        $region68: #{vae_forward.1} parent=11 // pred_fallthru
          _
      $region12: #{vae_forward.1} parent=5 // pred_fallthru
        _
      %p552 = scmp.lt.s32.totalorder %s29, 2
      // Predicated region
      $region69: #{vae_forward.1} parent=5 // pred_check
        %p553 = pneg %p552
      $region70: #{vae_forward.1} parent=5 // pred_check_branch
        %555 = sbr.rel (%p553) target = $region72
      $region71: #{vae_forward.1} parent=5 // pred_region
        // Predicated region
        $region73: #{vae_forward.1} parent=71 // pred_check
          %p556 = pneg %p49
        $region74: #{vae_forward.1} parent=71 // pred_check_branch
          %558 = sbr.rel (%p556) target = $region76
        $region75: #{vae_forward.1} parent=71 // pred_region
          %p559 = scmp.lt.s32.totalorder %s29, 1
          %s560 = scalar_select %p559, %s29, 1
          %s561 = smul.addr %s560, 8
          %s562 = smul.addr %s561, 4
          %s563 = scalar_lea.vmem %s0, %s562
        $region76: #{vae_forward.1} parent=71 // pred_fallthru
          _
        // Predicated region
        $region77: #{vae_forward.1} parent=71 // pred_check
          %p564 = pneg %p75
        $region78: #{vae_forward.1} parent=71 // pred_check_branch
          %566 = sbr.rel (%p564) target = $region80
        $region79: #{vae_forward.1} parent=71 // pred_region
          %p567 = scmp.lt.s32.totalorder %s29, 1
          %s568 = scalar_select %p567, %s29, 1
          %s569 = smul.addr %s568, 8
          %s570 = scalar_lea.vmem %s1, %s569
        $region80: #{vae_forward.1} parent=71 // pred_fallthru
          _
      $region72: #{vae_forward.1} parent=5 // pred_fallthru
        _
      %p571 = scmp.le.s32.totalorder 1, %s29
      %p572 = scmp.lt.s32.totalorder %s29, 3
      %p573 = pnand %p571, %p572
      %p574 = pneg %p573
      // Predicated region
      $region81: #{vae_forward.1} parent=5 // pred_check
        _
      $region82: #{vae_forward.1} parent=5 // pred_check_branch
        %576 = sbr.rel (%p573) target = $region84
      $region83: #{vae_forward.1} parent=5 // pred_region
        %s577 = ssub.s32 %s29, 1
        // Predicated region
        $region85: #{vae_forward.1} parent=83 // pred_check
          %p578 = pneg %p123
        $region86: #{vae_forward.1} parent=83 // pred_check_branch
          %580 = sbr.rel (%p578) target = $region88
        $region87: #{vae_forward.1} parent=83 // pred_region
          %581 = dma.done [#allocation3], 16
        $region88: #{vae_forward.1} parent=83 // pred_fallthru
          _
        // Predicated region
        $region89: #{vae_forward.1} parent=83 // pred_check
          %p582 = pneg %p165
        $region90: #{vae_forward.1} parent=83 // pred_check_branch
          %584 = sbr.rel (%p582) target = $region92
        $region91: #{vae_forward.1} parent=83 // pred_region
          %585 = dma.done [#allocation5], 16
        $region92: #{vae_forward.1} parent=83 // pred_fallthru
          _
        // Predicated region
        $region93: #{vae_forward.1} parent=83 // pred_check
          %p586 = pneg %p186
        $region94: #{vae_forward.1} parent=83 // pred_check_branch
          %588 = sbr.rel (%p586) target = $region96
        $region95: #{vae_forward.1} parent=83 // pred_region
          %589 = dma.done [#allocation5], 1024
        $region96: #{vae_forward.1} parent=83 // pred_fallthru
          _
        // Predicated region
        $region97: #{vae_forward.1} parent=83 // pred_check
          %p590 = pneg %p207
        $region98: #{vae_forward.1} parent=83 // pred_check_branch
          %592 = sbr.rel (%p590) target = $region100
        $region99: #{vae_forward.1} parent=83 // pred_region
          %593 = dma.done [#allocation8], 16
        $region100: #{vae_forward.1} parent=83 // pred_fallthru
          _
        // Predicated region
        $region101: #{vae_forward.1} parent=83 // pred_check
          %p594 = pneg %p291
        $region102: #{vae_forward.1} parent=83 // pred_check_branch
          %596 = sbr.rel (%p594) target = $region104
        $region103: #{vae_forward.1} parent=83 // pred_region
          %597 = dma.done [#allocation8], 16
        $region104: #{vae_forward.1} parent=83 // pred_fallthru
          _
        // Predicated region
        $region105: #{vae_forward.1} parent=83 // pred_check
          %p598 = pneg %p312
        $region106: #{vae_forward.1} parent=83 // pred_check_branch
          %600 = sbr.rel (%p598) target = $region108
        $region107: #{vae_forward.1} parent=83 // pred_region
          %601 = dma.done [#allocation11], 1024
        $region108: #{vae_forward.1} parent=83 // pred_fallthru
          _
        // Predicated region
        $region109: #{vae_forward.1} parent=83 // pred_check
          %p602 = pneg %p333
        $region110: #{vae_forward.1} parent=83 // pred_check_branch
          %604 = sbr.rel (%p602) target = $region112
        $region111: #{vae_forward.1} parent=83 // pred_region
          %605 = dma.done [#allocation11], 16
        $region112: #{vae_forward.1} parent=83 // pred_fallthru
          _
        // Predicated region
        $region113: #{vae_forward.1} parent=83 // pred_check
          %p606 = pneg %p375
        $region114: #{vae_forward.1} parent=83 // pred_check_branch
          %608 = sbr.rel (%p606) target = $region116
        $region115: #{vae_forward.1} parent=83 // pred_region
          %609 = dma.done [#allocation14], 128
        $region116: #{vae_forward.1} parent=83 // pred_fallthru
          _
        %p610 = scmp.lt.s32.totalorder %s34, 1
        %s611 = scalar_select %p610, %s34, 1
        %s612 = smul.addr %s611, 8
        %s613 = smul.addr %s612, 4
        %s614 = scalar_lea.vmem %s0, %s613
        %p615 = pneg %p55
        %p616 = pneg %p52
        %p617 = scmp.lt.s32.totalorder %s34, 1
        %s618 = scalar_select %p617, %s34, 1
        %s619 = smul.addr %s618, 8
        %s620 = scalar_lea.vmem %s1, %s619
        %p621 = pneg %p81
        %p622 = pneg %p78
        %p623 = pneg %p102
        %p624 = pneg %p99
        %p625 = pneg %p123
        %p626 = pneg %p120
        %p627 = pneg %p144
        %p628 = pneg %p141
        %p629 = pneg %p165
        %p630 = pneg %p162
        %p631 = pneg %p186
        %p632 = pneg %p183
        %p633 = pneg %p207
        %p634 = pneg %p204
        %p635 = pneg %p228
        %p636 = pneg %p225
        %p637 = pneg %p249
        %p638 = pneg %p246
        %p639 = pneg %p270
        %p640 = pneg %p267
        %p641 = pneg %p291
        %p642 = pneg %p288
        %p643 = pneg %p312
        %p644 = pneg %p309
        %p645 = pneg %p333
        %p646 = pneg %p330
        %p647 = pneg %p354
        %p648 = pneg %p351
        %p649 = pneg %p375
        %p650 = pneg %p372
        %p651 = pneg %p401
        %p652 = pneg %p398
        %p653 = scmp.lt.s32.totalorder %s34, 1
        %s654 = scalar_select %p653, %s34, 1
        %s655 = smul.addr %s654, 8
        %s656 = smul.addr %s655, 8
        %s657 = scalar_lea.vmem %s16, %s656
        %p658 = pneg %p427
        %p659 = pneg %p424
        %p660 = scmp.lt.s32.totalorder %s34, 1
        %s661 = scalar_select %p660, %s34, 1
        %s662 = smul.addr %s661, 3
        %s663 = smul.addr %s662, 8
        %s664 = scalar_lea.vmem %s17, %s663
        %p665 = scmp.lt.s32.totalorder %s34, 1
        %s666 = scalar_select %p665, %s34, 1
        %s667 = smul.addr %s666, 8
        %s668 = smul.addr %s667, 4
        %s669 = scalar_lea.vmem %s0, %s668
        %p670 = scmp.lt.s32.totalorder %s34, 1
        %s671 = scalar_select %p670, %s34, 1
        %s672 = smul.addr %s671, 8
        %s673 = scalar_lea.vmem %s1, %s672
        %p674 = scmp.lt.s32.totalorder %s34, 1
        %s675 = scalar_select %p674, %s34, 1
        %s676 = smul.addr %s675, 8
        %s677 = smul.addr %s676, 8
        %s678 = scalar_lea.vmem %s16, %s677
        %p679 = scmp.lt.s32.totalorder %s34, 1
        %s680 = scalar_select %p679, %s34, 1
        %s681 = smul.addr %s680, 3
        %s682 = smul.addr %s681, 8
        %s683 = scalar_lea.vmem %s17, %s682
        %v685 = vld [vmem:[%s669] sm:$0xff]
        %v686 = vld [vmem:[%s669 + $0x8] sm:$0xff]
        %v687 = vld [vmem:[%s669 + $0x10] sm:$0xff]
        %v688 = vld [vmem:[%s669 + $0x18] sm:$0xff]
        %v689 = vld [vmem:[%s4] sm:$0xf]
        %v690 = vld [vmem:[%s4 + $0x4] sm:$0xf]
        %v691 = vld [vmem:[%s4 + $0x8] sm:$0xf]
        %v692 = vld [vmem:[%s4 + $0xc] sm:$0xf]
        %v693 = vld [vmem:[%s4 + $0x10] sm:$0xf]
        %v694 = vld [vmem:[%s4 + $0x14] sm:$0xf]
        %v695 = vld [vmem:[%s4 + $0x18] sm:$0xf]
        %v696 = vld [vmem:[%s4 + $0x1c] sm:$0xf]
        %v697 = vld [vmem:[%s4 + $0x20] sm:$0xf]
        %v698 = vld [vmem:[%s4 + $0x24] sm:$0xf]
        %v699 = vld [vmem:[%s4 + $0x28] sm:$0xf]
        %v700 = vld [vmem:[%s4 + $0x2c] sm:$0xf]
        %v701 = vld [vmem:[%s4 + $0x30] sm:$0xf]
        %v702 = vld [vmem:[%s4 + $0x34] sm:$0xf]
        %v703 = vld [vmem:[%s4 + $0x38] sm:$0xf]
        %v704 = vld [vmem:[%s4 + $0x3c] sm:$0xf]
        %v705 = vld [vmem:[%s4 + $0x40] sm:$0xf]
        %v706 = vld [vmem:[%s4 + $0x44] sm:$0xf]
        %v707 = vld [vmem:[%s4 + $0x48] sm:$0xf]
        %v708 = vld [vmem:[%s4 + $0x4c] sm:$0xf]
        %v709 = vld [vmem:[%s4 + $0x50] sm:$0xf]
        %v710 = vld [vmem:[%s4 + $0x54] sm:$0xf]
        %v711 = vld [vmem:[%s4 + $0x58] sm:$0xf]
        %v712 = vld [vmem:[%s4 + $0x5c] sm:$0xf]
        %v713 = vld [vmem:[%s4 + $0x60] sm:$0xf]
        %v714 = vld [vmem:[%s4 + $0x64] sm:$0xf]
        %v715 = vld [vmem:[%s4 + $0x68] sm:$0xf]
        %v716 = vld [vmem:[%s4 + $0x6c] sm:$0xf]
        %v717 = vld [vmem:[%s4 + $0x70] sm:$0xf]
        %v718 = vld [vmem:[%s4 + $0x74] sm:$0xf]
        %v719 = vld [vmem:[%s4 + $0x78] sm:$0xf]
        %v720 = vld [vmem:[%s4 + $0x7c] sm:$0xf]
        %v721 = vld [vmem:[%s4 + $0x80] sm:$0xf]
        %v722 = vld [vmem:[%s4 + $0x84] sm:$0xf]
        %v723 = vld [vmem:[%s4 + $0x88] sm:$0xf]
        %v724 = vld [vmem:[%s4 + $0x8c] sm:$0xf]
        %v725 = vld [vmem:[%s4 + $0x90] sm:$0xf]
        %v726 = vld [vmem:[%s4 + $0x94] sm:$0xf]
        %v727 = vld [vmem:[%s4 + $0x98] sm:$0xf]
        %v728 = vld [vmem:[%s4 + $0x9c] sm:$0xf]
        %v729 = vld [vmem:[%s4 + $0xa0] sm:$0xf]
        %v730 = vld [vmem:[%s4 + $0xa4] sm:$0xf]
        %v731 = vld [vmem:[%s4 + $0xa8] sm:$0xf]
        %v732 = vld [vmem:[%s4 + $0xac] sm:$0xf]
        %v733 = vld [vmem:[%s4 + $0xb0] sm:$0xf]
        %v734 = vld [vmem:[%s4 + $0xb4] sm:$0xf]
        %v735 = vld [vmem:[%s4 + $0xb8] sm:$0xf]
        %v736 = vld [vmem:[%s4 + $0xbc] sm:$0xf]
        %v737 = vld [vmem:[%s4 + $0xc0] sm:$0xf]
        %v738 = vld [vmem:[%s4 + $0xc4] sm:$0xf]
        %v739 = vld [vmem:[%s4 + $0xc8] sm:$0xf]
        %v740 = vld [vmem:[%s4 + $0xcc] sm:$0xf]
        %v741 = vld [vmem:[%s4 + $0xd0] sm:$0xf]
        %v742 = vld [vmem:[%s4 + $0xd4] sm:$0xf]
        %v743 = vld [vmem:[%s4 + $0xd8] sm:$0xf]
        %v744 = vld [vmem:[%s4 + $0xdc] sm:$0xf]
        %v745 = vld [vmem:[%s4 + $0xe0] sm:$0xf]
        %v746 = vld [vmem:[%s4 + $0xe4] sm:$0xf]
        %v747 = vld [vmem:[%s4 + $0xe8] sm:$0xf]
        %v748 = vld [vmem:[%s4 + $0xec] sm:$0xf]
        %v749 = vld [vmem:[%s4 + $0xf0] sm:$0xf]
        %v750 = vld [vmem:[%s4 + $0xf4] sm:$0xf]
        %v751 = vld [vmem:[%s4 + $0xf8] sm:$0xf]
        %v752 = vld [vmem:[%s4 + $0xfc] sm:$0xf]
        %v753 = vld [vmem:[%s4 + $0x100] sm:$0xf]
        %v754 = vld [vmem:[%s4 + $0x104] sm:$0xf]
        %v755 = vld [vmem:[%s4 + $0x108] sm:$0xf]
        %v756 = vld [vmem:[%s4 + $0x10c] sm:$0xf]
        %v757 = vld [vmem:[%s4 + $0x110] sm:$0xf]
        %v758 = vld [vmem:[%s4 + $0x114] sm:$0xf]
        %v759 = vld [vmem:[%s4 + $0x118] sm:$0xf]
        %v760 = vld [vmem:[%s4 + $0x11c] sm:$0xf]
        %v761 = vld [vmem:[%s4 + $0x120] sm:$0xf]
        %v762 = vld [vmem:[%s4 + $0x124] sm:$0xf]
        %v763 = vld [vmem:[%s4 + $0x128] sm:$0xf]
        %v764 = vld [vmem:[%s4 + $0x12c] sm:$0xf]
        %v765 = vld [vmem:[%s4 + $0x130] sm:$0xf]
        %v766 = vld [vmem:[%s4 + $0x134] sm:$0xf]
        %v767 = vld [vmem:[%s4 + $0x138] sm:$0xf]
        %v768 = vld [vmem:[%s4 + $0x13c] sm:$0xf]
        %v769 = vld [vmem:[%s4 + $0x140] sm:$0xf]
        %v770 = vld [vmem:[%s4 + $0x144] sm:$0xf]
        %v771 = vld [vmem:[%s4 + $0x148] sm:$0xf]
        %v772 = vld [vmem:[%s4 + $0x14c] sm:$0xf]
        %v773 = vld [vmem:[%s4 + $0x150] sm:$0xf]
        %v774 = vld [vmem:[%s4 + $0x154] sm:$0xf]
        %v775 = vld [vmem:[%s4 + $0x158] sm:$0xf]
        %v776 = vld [vmem:[%s4 + $0x15c] sm:$0xf]
        %v777 = vld [vmem:[%s4 + $0x160] sm:$0xf]
        %v778 = vld [vmem:[%s4 + $0x164] sm:$0xf]
        %v779 = vld [vmem:[%s4 + $0x168] sm:$0xf]
        %v780 = vld [vmem:[%s4 + $0x16c] sm:$0xf]
        %v781 = vld [vmem:[%s4 + $0x170] sm:$0xf]
        %v782 = vld [vmem:[%s4 + $0x174] sm:$0xf]
        %v783 = vld [vmem:[%s4 + $0x178] sm:$0xf]
        %v784 = vld [vmem:[%s4 + $0x17c] sm:$0xf]
        %v785 = vld [vmem:[%s4 + $0x180] sm:$0xf]
        %v786 = vld [vmem:[%s4 + $0x184] sm:$0xf]
        %v787 = vld [vmem:[%s4 + $0x188] sm:$0xf]
        %v788 = vld [vmem:[%s4 + $0x18c] sm:$0xf]
        %v789 = vld [vmem:[%s4 + $0x190] sm:$0xf]
        %v790 = vld [vmem:[%s4 + $0x194] sm:$0xf]
        %v791 = vld [vmem:[%s4 + $0x198] sm:$0xf]
        %v792 = vld [vmem:[%s4 + $0x19c] sm:$0xf]
        %v793 = vld [vmem:[%s4 + $0x1a0] sm:$0xf]
        %v794 = vld [vmem:[%s4 + $0x1a4] sm:$0xf]
        %v795 = vld [vmem:[%s4 + $0x1a8] sm:$0xf]
        %v796 = vld [vmem:[%s4 + $0x1ac] sm:$0xf]
        %v797 = vld [vmem:[%s4 + $0x1b0] sm:$0xf]
        %v798 = vld [vmem:[%s4 + $0x1b4] sm:$0xf]
        %v799 = vld [vmem:[%s4 + $0x1b8] sm:$0xf]
        %v800 = vld [vmem:[%s4 + $0x1bc] sm:$0xf]
        %v801 = vld [vmem:[%s4 + $0x1c0] sm:$0xf]
        %v802 = vld [vmem:[%s4 + $0x1c4] sm:$0xf]
        %v803 = vld [vmem:[%s4 + $0x1c8] sm:$0xf]
        %v804 = vld [vmem:[%s4 + $0x1cc] sm:$0xf]
        %v805 = vld [vmem:[%s4 + $0x1d0] sm:$0xf]
        %v806 = vld [vmem:[%s4 + $0x1d4] sm:$0xf]
        %v807 = vld [vmem:[%s4 + $0x1d8] sm:$0xf]
        %v808 = vld [vmem:[%s4 + $0x1dc] sm:$0xf]
        %v809 = vld [vmem:[%s4 + $0x1e0] sm:$0xf]
        %v810 = vld [vmem:[%s4 + $0x1e4] sm:$0xf]
        %v811 = vld [vmem:[%s4 + $0x1e8] sm:$0xf]
        %v812 = vld [vmem:[%s4 + $0x1ec] sm:$0xf]
        %v813 = vld [vmem:[%s4 + $0x1f0] sm:$0xf]
        %v814 = vld [vmem:[%s4 + $0x1f4] sm:$0xf]
        %v815 = vld [vmem:[%s4 + $0x1f8] sm:$0xf]
        %v816 = vld [vmem:[%s4 + $0x1fc] sm:$0xf]
        %v817 = vld [vmem:[#allocation4] sm:$0x1]
        %v819 = vlaneseq
        %v820 = vshrl.u32 %v819, 7
        %v821 = vsub.s32 0, %v820
        %v822 = vrot.slane %v817, %v821
        %v828 = vunpack.c.l.b16 %v685
        %v829 = vunpack.c.h.b16 %v685
        %v830 = vunpack.c.l.b16 %v686
        %v831 = vunpack.c.h.b16 %v686
        %v832 = vunpack.c.l.b16 %v687
        %v833 = vunpack.c.h.b16 %v687
        %v834 = vunpack.c.l.b16 %v688
        %v835 = vunpack.c.h.b16 %v688
        %v836 = vpack.c.b16 %v828, %v828
        %v837 = vpack.c.b16 %v829, %v829
        %v838 = vpack.c.b16 %v830, %v830
        %v839 = vpack.c.b16 %v831, %v831
        %v840 = vpack.c.b16 %v832, %v832
        %v841 = vpack.c.b16 %v833, %v833
        %v842 = vpack.c.b16 %v834, %v834
        %v843 = vpack.c.b16 %v835, %v835
        %v980 = vunpack.c.l.b16 %v689
        %v981 = vunpack.c.l.b16 %v690
        %v982 = vunpack.c.l.b16 %v691
        %v983 = vunpack.c.l.b16 %v692
        %v984 = vunpack.c.l.b16 %v693
        %v985 = vunpack.c.l.b16 %v694
        %v986 = vunpack.c.l.b16 %v695
        %v987 = vunpack.c.l.b16 %v696
        %v988 = vunpack.c.l.b16 %v697
        %v989 = vunpack.c.l.b16 %v698
        %v990 = vunpack.c.l.b16 %v699
        %v991 = vunpack.c.l.b16 %v700
        %v992 = vunpack.c.l.b16 %v701
        %v993 = vunpack.c.l.b16 %v702
        %v994 = vunpack.c.l.b16 %v703
        %v995 = vunpack.c.l.b16 %v704
        %v996 = vunpack.c.l.b16 %v705
        %v997 = vunpack.c.l.b16 %v706
        %v998 = vunpack.c.l.b16 %v707
        %v999 = vunpack.c.l.b16 %v708
        %v1000 = vunpack.c.l.b16 %v709
        %v1001 = vunpack.c.l.b16 %v710
        %v1002 = vunpack.c.l.b16 %v711
        %v1003 = vunpack.c.l.b16 %v712
        %v1004 = vunpack.c.l.b16 %v713
        %v1005 = vunpack.c.l.b16 %v714
        %v1006 = vunpack.c.l.b16 %v715
        %v1007 = vunpack.c.l.b16 %v716
        %v1008 = vunpack.c.l.b16 %v717
        %v1009 = vunpack.c.l.b16 %v718
        %v1010 = vunpack.c.l.b16 %v719
        %v1011 = vunpack.c.l.b16 %v720
        %v1012 = vunpack.c.l.b16 %v721
        %v1013 = vunpack.c.l.b16 %v722
        %v1014 = vunpack.c.l.b16 %v723
        %v1015 = vunpack.c.l.b16 %v724
        %v1016 = vunpack.c.l.b16 %v725
        %v1017 = vunpack.c.l.b16 %v726
        %v1018 = vunpack.c.l.b16 %v727
        %v1019 = vunpack.c.l.b16 %v728
        %v1020 = vunpack.c.l.b16 %v729
        %v1021 = vunpack.c.l.b16 %v730
        %v1022 = vunpack.c.l.b16 %v731
        %v1023 = vunpack.c.l.b16 %v732
        %v1024 = vunpack.c.l.b16 %v733
        %v1025 = vunpack.c.l.b16 %v734
        %v1026 = vunpack.c.l.b16 %v735
        %v1027 = vunpack.c.l.b16 %v736
        %v1028 = vunpack.c.l.b16 %v737
        %v1029 = vunpack.c.l.b16 %v738
        %v1030 = vunpack.c.l.b16 %v739
        %v1031 = vunpack.c.l.b16 %v740
        %v1032 = vunpack.c.l.b16 %v741
        %v1033 = vunpack.c.l.b16 %v742
        %v1034 = vunpack.c.l.b16 %v743
        %v1035 = vunpack.c.l.b16 %v744
        %v1036 = vunpack.c.l.b16 %v745
        %v1037 = vunpack.c.l.b16 %v746
        %v1038 = vunpack.c.l.b16 %v747
        %v1039 = vunpack.c.l.b16 %v748
        %v1040 = vunpack.c.l.b16 %v749
        %v1041 = vunpack.c.l.b16 %v750
        %v1042 = vunpack.c.l.b16 %v751
        %v1043 = vunpack.c.l.b16 %v752
        %v1044 = vunpack.c.l.b16 %v753
        %v1045 = vunpack.c.l.b16 %v754
        %v1046 = vunpack.c.l.b16 %v755
        %v1047 = vunpack.c.l.b16 %v756
        %v1048 = vunpack.c.l.b16 %v757
        %v1049 = vunpack.c.l.b16 %v758
        %v1050 = vunpack.c.l.b16 %v759
        %v1051 = vunpack.c.l.b16 %v760
        %v1052 = vunpack.c.l.b16 %v761
        %v1053 = vunpack.c.l.b16 %v762
        %v1054 = vunpack.c.l.b16 %v763
        %v1055 = vunpack.c.l.b16 %v764
        %v1056 = vunpack.c.l.b16 %v765
        %v1057 = vunpack.c.l.b16 %v766
        %v1058 = vunpack.c.l.b16 %v767
        %v1059 = vunpack.c.l.b16 %v768
        %v1060 = vunpack.c.l.b16 %v769
        %v1061 = vunpack.c.l.b16 %v770
        %v1062 = vunpack.c.l.b16 %v771
        %v1063 = vunpack.c.l.b16 %v772
        %v1064 = vunpack.c.l.b16 %v773
        %v1065 = vunpack.c.l.b16 %v774
        %v1066 = vunpack.c.l.b16 %v775
        %v1067 = vunpack.c.l.b16 %v776
        %v1068 = vunpack.c.l.b16 %v777
        %v1069 = vunpack.c.l.b16 %v778
        %v1070 = vunpack.c.l.b16 %v779
        %v1071 = vunpack.c.l.b16 %v780
        %v1072 = vunpack.c.l.b16 %v781
        %v1073 = vunpack.c.l.b16 %v782
        %v1074 = vunpack.c.l.b16 %v783
        %v1075 = vunpack.c.l.b16 %v784
        %v1076 = vunpack.c.l.b16 %v785
        %v1077 = vunpack.c.l.b16 %v786
        %v1078 = vunpack.c.l.b16 %v787
        %v1079 = vunpack.c.l.b16 %v788
        %v1080 = vunpack.c.l.b16 %v789
        %v1081 = vunpack.c.l.b16 %v790
        %v1082 = vunpack.c.l.b16 %v791
        %v1083 = vunpack.c.l.b16 %v792
        %v1084 = vunpack.c.l.b16 %v793
        %v1085 = vunpack.c.l.b16 %v794
        %v1086 = vunpack.c.l.b16 %v795
        %v1087 = vunpack.c.l.b16 %v796
        %v1088 = vunpack.c.l.b16 %v797
        %v1089 = vunpack.c.l.b16 %v798
        %v1090 = vunpack.c.l.b16 %v799
        %v1091 = vunpack.c.l.b16 %v800
        %v1092 = vunpack.c.l.b16 %v801
        %v1093 = vunpack.c.l.b16 %v802
        %v1094 = vunpack.c.l.b16 %v803
        %v1095 = vunpack.c.l.b16 %v804
        %v1096 = vunpack.c.l.b16 %v805
        %v1097 = vunpack.c.l.b16 %v806
        %v1098 = vunpack.c.l.b16 %v807
        %v1099 = vunpack.c.l.b16 %v808
        %v1100 = vunpack.c.l.b16 %v809
        %v1101 = vunpack.c.l.b16 %v810
        %v1102 = vunpack.c.l.b16 %v811
        %v1103 = vunpack.c.l.b16 %v812
        %v1104 = vunpack.c.l.b16 %v813
        %v1105 = vunpack.c.l.b16 %v814
        %v1106 = vunpack.c.l.b16 %v815
        %v1107 = vunpack.c.l.b16 %v816
        %v1108 = vpack.c.b16 %v981, %v980
        %v1109 = vpack.c.b16 %v983, %v982
        %v1110 = vpack.c.b16 %v985, %v984
        %v1111 = vpack.c.b16 %v987, %v986
        %v1112 = vpack.c.b16 %v989, %v988
        %v1113 = vpack.c.b16 %v991, %v990
        %v1114 = vpack.c.b16 %v993, %v992
        %v1115 = vpack.c.b16 %v995, %v994
        %v1116 = vpack.c.b16 %v997, %v996
        %v1117 = vpack.c.b16 %v999, %v998
        %v1118 = vpack.c.b16 %v1001, %v1000
        %v1119 = vpack.c.b16 %v1003, %v1002
        %v1120 = vpack.c.b16 %v1005, %v1004
        %v1121 = vpack.c.b16 %v1007, %v1006
        %v1122 = vpack.c.b16 %v1009, %v1008
        %v1123 = vpack.c.b16 %v1011, %v1010
        %v1124 = vpack.c.b16 %v1013, %v1012
        %v1125 = vpack.c.b16 %v1015, %v1014
        %v1126 = vpack.c.b16 %v1017, %v1016
        %v1127 = vpack.c.b16 %v1019, %v1018
        %v1128 = vpack.c.b16 %v1021, %v1020
        %v1129 = vpack.c.b16 %v1023, %v1022
        %v1130 = vpack.c.b16 %v1025, %v1024
        %v1131 = vpack.c.b16 %v1027, %v1026
        %v1132 = vpack.c.b16 %v1029, %v1028
        %v1133 = vpack.c.b16 %v1031, %v1030
        %v1134 = vpack.c.b16 %v1033, %v1032
        %v1135 = vpack.c.b16 %v1035, %v1034
        %v1136 = vpack.c.b16 %v1037, %v1036
        %v1137 = vpack.c.b16 %v1039, %v1038
        %v1138 = vpack.c.b16 %v1041, %v1040
        %v1139 = vpack.c.b16 %v1043, %v1042
        %v1140 = vpack.c.b16 %v1045, %v1044
        %v1141 = vpack.c.b16 %v1047, %v1046
        %v1142 = vpack.c.b16 %v1049, %v1048
        %v1143 = vpack.c.b16 %v1051, %v1050
        %v1144 = vpack.c.b16 %v1053, %v1052
        %v1145 = vpack.c.b16 %v1055, %v1054
        %v1146 = vpack.c.b16 %v1057, %v1056
        %v1147 = vpack.c.b16 %v1059, %v1058
        %v1148 = vpack.c.b16 %v1061, %v1060
        %v1149 = vpack.c.b16 %v1063, %v1062
        %v1150 = vpack.c.b16 %v1065, %v1064
        %v1151 = vpack.c.b16 %v1067, %v1066
        %v1152 = vpack.c.b16 %v1069, %v1068
        %v1153 = vpack.c.b16 %v1071, %v1070
        %v1154 = vpack.c.b16 %v1073, %v1072
        %v1155 = vpack.c.b16 %v1075, %v1074
        %v1156 = vpack.c.b16 %v1077, %v1076
        %v1157 = vpack.c.b16 %v1079, %v1078
        %v1158 = vpack.c.b16 %v1081, %v1080
        %v1159 = vpack.c.b16 %v1083, %v1082
        %v1160 = vpack.c.b16 %v1085, %v1084
        %v1161 = vpack.c.b16 %v1087, %v1086
        %v1162 = vpack.c.b16 %v1089, %v1088
        %v1163 = vpack.c.b16 %v1091, %v1090
        %v1164 = vpack.c.b16 %v1093, %v1092
        %v1165 = vpack.c.b16 %v1095, %v1094
        %v1166 = vpack.c.b16 %v1097, %v1096
        %v1167 = vpack.c.b16 %v1099, %v1098
        %v1168 = vpack.c.b16 %v1101, %v1100
        %v1169 = vpack.c.b16 %v1103, %v1102
        %v1170 = vpack.c.b16 %v1105, %v1104
        %v1171 = vpack.c.b16 %v1107, %v1106
        %1236 = vmatprep.subr.bf16.mxu0 0
        %1237 = vmatpush1.bf16.msra.mxu0 %v1108
        %1238 = vmatprep.subr.bf16.mxu0 0
        %1239 = vmatpush1.bf16.msra.mxu0 %v1109
        %1240 = vmatprep.subr.bf16.mxu0 0
        %1241 = vmatpush1.bf16.msra.mxu0 %v1110
        %1242 = vmatprep.subr.bf16.mxu0 0
        %1243 = vmatpush1.bf16.msra.mxu0 %v1111
        %1244 = vmatprep.subr.bf16.mxu0 0
        %1245 = vmatpush1.bf16.msra.mxu0 %v1112
        %1246 = vmatprep.subr.bf16.mxu0 0
        %1247 = vmatpush1.bf16.msra.mxu0 %v1113
        %1248 = vmatprep.subr.bf16.mxu0 0
        %1249 = vmatpush1.bf16.msra.mxu0 %v1114
        %1250 = vmatprep.subr.bf16.mxu0 0
        %1251 = vmatpush1.bf16.msra.mxu0 %v1115
        %1252 = vmatprep.subr.bf16.mxu0 0
        %1253 = vmatpush1.bf16.msra.mxu0 %v1116
        %1254 = vmatprep.subr.bf16.mxu0 0
        %1255 = vmatpush1.bf16.msra.mxu0 %v1117
        %1256 = vmatprep.subr.bf16.mxu0 0
        %1257 = vmatpush1.bf16.msra.mxu0 %v1118
        %1258 = vmatprep.subr.bf16.mxu0 0
        %1259 = vmatpush1.bf16.msra.mxu0 %v1119
        %1260 = vmatprep.subr.bf16.mxu0 0
        %1261 = vmatpush1.bf16.msra.mxu0 %v1120
        %1262 = vmatprep.subr.bf16.mxu0 0
        %1263 = vmatpush1.bf16.msra.mxu0 %v1121
        %1264 = vmatprep.subr.bf16.mxu0 0
        %1265 = vmatpush1.bf16.msra.mxu0 %v1122
        %1266 = vmatprep.subr.bf16.mxu0 0
        %1267 = vmatpush1.bf16.msra.mxu0 %v1123
        %1268 = vmatprep.mubr.bf16.mxu0 %v837
        %1269 = vmatmul.mubr.bf16.gmra.mrb[0].mxu0 %v836
        %v1270 = vpop.f32.mrb[0].mxu0
        %v1271 = vadd.f32 %v822, %v1270
        %v1272 = vpop.f32.mrb[0].mxu0
        %v1273 = vpop.f32.mrb[0].mxu0
        %v1274 = vpop.f32.mrb[0].mxu0
        %1275 = vdwg.mxu0
        %1276 = vmatprep.subr.bf16.mxu0 0
        %1277 = vmatpush1.bf16.msra.mxu0 %v1124
        %1278 = vmatprep.subr.bf16.mxu0 0
        %1279 = vmatpush1.bf16.msra.mxu0 %v1125
        %1280 = vmatprep.subr.bf16.mxu0 0
        %1281 = vmatpush1.bf16.msra.mxu0 %v1126
        %1282 = vmatprep.subr.bf16.mxu0 0
        %1283 = vmatpush1.bf16.msra.mxu0 %v1127
        %1284 = vmatprep.subr.bf16.mxu0 0
        %1285 = vmatpush1.bf16.msra.mxu0 %v1128
        %1286 = vmatprep.subr.bf16.mxu0 0
        %1287 = vmatpush1.bf16.msra.mxu0 %v1129
        %1288 = vmatprep.subr.bf16.mxu0 0
        %1289 = vmatpush1.bf16.msra.mxu0 %v1130
        %1290 = vmatprep.subr.bf16.mxu0 0
        %1291 = vmatpush1.bf16.msra.mxu0 %v1131
        %1292 = vmatprep.subr.bf16.mxu0 0
        %1293 = vmatpush1.bf16.msra.mxu0 %v1132
        %1294 = vmatprep.subr.bf16.mxu0 0
        %1295 = vmatpush1.bf16.msra.mxu0 %v1133
        %1296 = vmatprep.subr.bf16.mxu0 0
        %1297 = vmatpush1.bf16.msra.mxu0 %v1134
        %1298 = vmatprep.subr.bf16.mxu0 0
        %1299 = vmatpush1.bf16.msra.mxu0 %v1135
        %1300 = vmatprep.subr.bf16.mxu0 0
        %1301 = vmatpush1.bf16.msra.mxu0 %v1136
        %1302 = vmatprep.subr.bf16.mxu0 0
        %1303 = vmatpush1.bf16.msra.mxu0 %v1137
        %1304 = vmatprep.subr.bf16.mxu0 0
        %1305 = vmatpush1.bf16.msra.mxu0 %v1138
        %1306 = vmatprep.subr.bf16.mxu0 0
        %1307 = vmatpush1.bf16.msra.mxu0 %v1139
        %1308 = vmatprep.mubr.bf16.mxu0 %v839
        %1309 = vmatmul.mubr.bf16.gmra.mrb[0].mxu0 %v838
        %v1310 = vpop.f32.mrb[0].mxu0
        %v1311 = vadd.f32 %v1271, %v1310
        %v1312 = vpop.f32.mrb[0].mxu0
        %v1313 = vpop.f32.mrb[0].mxu0
        %v1314 = vpop.f32.mrb[0].mxu0
        %1315 = vdwg.mxu0
        %1316 = vmatprep.subr.bf16.mxu0 0
        %1317 = vmatpush1.bf16.msra.mxu0 %v1140
        %1318 = vmatprep.subr.bf16.mxu0 0
        %1319 = vmatpush1.bf16.msra.mxu0 %v1141
        %1320 = vmatprep.subr.bf16.mxu0 0
        %1321 = vmatpush1.bf16.msra.mxu0 %v1142
        %1322 = vmatprep.subr.bf16.mxu0 0
        %1323 = vmatpush1.bf16.msra.mxu0 %v1143
        %1324 = vmatprep.subr.bf16.mxu0 0
        %1325 = vmatpush1.bf16.msra.mxu0 %v1144
        %1326 = vmatprep.subr.bf16.mxu0 0
        %1327 = vmatpush1.bf16.msra.mxu0 %v1145
        %1328 = vmatprep.subr.bf16.mxu0 0
        %1329 = vmatpush1.bf16.msra.mxu0 %v1146
        %1330 = vmatprep.subr.bf16.mxu0 0
        %1331 = vmatpush1.bf16.msra.mxu0 %v1147
        %1332 = vmatprep.subr.bf16.mxu0 0
        %1333 = vmatpush1.bf16.msra.mxu0 %v1148
        %1334 = vmatprep.subr.bf16.mxu0 0
        %1335 = vmatpush1.bf16.msra.mxu0 %v1149
        %1336 = vmatprep.subr.bf16.mxu0 0
        %1337 = vmatpush1.bf16.msra.mxu0 %v1150
        %1338 = vmatprep.subr.bf16.mxu0 0
        %1339 = vmatpush1.bf16.msra.mxu0 %v1151
        %1340 = vmatprep.subr.bf16.mxu0 0
        %1341 = vmatpush1.bf16.msra.mxu0 %v1152
        %1342 = vmatprep.subr.bf16.mxu0 0
        %1343 = vmatpush1.bf16.msra.mxu0 %v1153
        %1344 = vmatprep.subr.bf16.mxu0 0
        %1345 = vmatpush1.bf16.msra.mxu0 %v1154
        %1346 = vmatprep.subr.bf16.mxu0 0
        %1347 = vmatpush1.bf16.msra.mxu0 %v1155
        %1348 = vmatprep.mubr.bf16.mxu0 %v841
        %1349 = vmatmul.mubr.bf16.gmra.mrb[0].mxu0 %v840
        %v1350 = vpop.f32.mrb[0].mxu0
        %v1351 = vadd.f32 %v1311, %v1350
        %v1352 = vpop.f32.mrb[0].mxu0
        %v1353 = vpop.f32.mrb[0].mxu0
        %v1354 = vpop.f32.mrb[0].mxu0
        %1355 = vdwg.mxu0
        %1356 = vmatprep.subr.bf16.mxu0 0
        %1357 = vmatpush1.bf16.msra.mxu0 %v1156
        %1358 = vmatprep.subr.bf16.mxu0 0
        %1359 = vmatpush1.bf16.msra.mxu0 %v1157
        %1360 = vmatprep.subr.bf16.mxu0 0
        %1361 = vmatpush1.bf16.msra.mxu0 %v1158
        %1362 = vmatprep.subr.bf16.mxu0 0
        %1363 = vmatpush1.bf16.msra.mxu0 %v1159
        %1364 = vmatprep.subr.bf16.mxu0 0
        %1365 = vmatpush1.bf16.msra.mxu0 %v1160
        %1366 = vmatprep.subr.bf16.mxu0 0
        %1367 = vmatpush1.bf16.msra.mxu0 %v1161
        %1368 = vmatprep.subr.bf16.mxu0 0
        %1369 = vmatpush1.bf16.msra.mxu0 %v1162
        %1370 = vmatprep.subr.bf16.mxu0 0
        %1371 = vmatpush1.bf16.msra.mxu0 %v1163
        %1372 = vmatprep.subr.bf16.mxu0 0
        %1373 = vmatpush1.bf16.msra.mxu0 %v1164
        %1374 = vmatprep.subr.bf16.mxu0 0
        %1375 = vmatpush1.bf16.msra.mxu0 %v1165
        %1376 = vmatprep.subr.bf16.mxu0 0
        %1377 = vmatpush1.bf16.msra.mxu0 %v1166
        %1378 = vmatprep.subr.bf16.mxu0 0
        %1379 = vmatpush1.bf16.msra.mxu0 %v1167
        %1380 = vmatprep.subr.bf16.mxu0 0
        %1381 = vmatpush1.bf16.msra.mxu0 %v1168
        %1382 = vmatprep.subr.bf16.mxu0 0
        %1383 = vmatpush1.bf16.msra.mxu0 %v1169
        %1384 = vmatprep.subr.bf16.mxu0 0
        %1385 = vmatpush1.bf16.msra.mxu0 %v1170
        %1386 = vmatprep.subr.bf16.mxu0 0
        %1387 = vmatpush1.bf16.msra.mxu0 %v1171
        %1388 = vmatprep.mubr.bf16.mxu0 %v843
        %1389 = vmatmul.mubr.bf16.gmra.mrb[0].mxu0 %v842
        %v1390 = vpop.f32.mrb[0].mxu0
        %v1391 = vadd.f32 %v1351, %v1390
        %v1392 = vpop.f32.mrb[0].mxu0
        %v1393 = vpop.f32.mrb[0].mxu0
        %v1394 = vpop.f32.mrb[0].mxu0
        %1395 = vdwg.mxu0
        %v1396 = vmax.f32 %v1391, 0.0
        %v1397 = vpack.c.bf16 %v1396, %v1396
        %v1398 = vld [vmem:[#allocation6] sm:$0xf]
        %v1399 = vld [vmem:[#allocation6 + $0x4] sm:$0xf]
        %v1400 = vld [vmem:[#allocation6 + $0x8] sm:$0xf]
        %v1401 = vld [vmem:[#allocation6 + $0xc] sm:$0xf]
        %v1402 = vld [vmem:[#allocation6 + $0x10] sm:$0xf]
        %v1403 = vld [vmem:[#allocation6 + $0x14] sm:$0xf]
        %v1404 = vld [vmem:[#allocation6 + $0x18] sm:$0xf]
        %v1405 = vld [vmem:[#allocation6 + $0x1c] sm:$0xf]
        %v1406 = vld [vmem:[#allocation6 + $0x20] sm:$0xf]
        %v1407 = vld [vmem:[#allocation6 + $0x24] sm:$0xf]
        %v1408 = vld [vmem:[#allocation6 + $0x28] sm:$0xf]
        %v1409 = vld [vmem:[#allocation6 + $0x2c] sm:$0xf]
        %v1410 = vld [vmem:[#allocation6 + $0x30] sm:$0xf]
        %v1411 = vld [vmem:[#allocation6 + $0x34] sm:$0xf]
        %v1412 = vld [vmem:[#allocation6 + $0x38] sm:$0xf]
        %v1413 = vld [vmem:[#allocation6 + $0x3c] sm:$0xf]
        %v1414 = vld [vmem:[#allocation7] sm:$0x1]
        %v1416 = vlaneseq
        %v1417 = vshrl.u32 %v1416, 7
        %v1418 = vsub.s32 0, %v1417
        %v1419 = vrot.slane %v1414, %v1418
        %v1437 = vunpack.c.l.b16 %v1398
        %v1438 = vunpack.c.l.b16 %v1399
        %v1439 = vunpack.c.l.b16 %v1400
        %v1440 = vunpack.c.l.b16 %v1401
        %v1441 = vunpack.c.l.b16 %v1402
        %v1442 = vunpack.c.l.b16 %v1403
        %v1443 = vunpack.c.l.b16 %v1404
        %v1444 = vunpack.c.l.b16 %v1405
        %v1445 = vunpack.c.l.b16 %v1406
        %v1446 = vunpack.c.l.b16 %v1407
        %v1447 = vunpack.c.l.b16 %v1408
        %v1448 = vunpack.c.l.b16 %v1409
        %v1449 = vunpack.c.l.b16 %v1410
        %v1450 = vunpack.c.l.b16 %v1411
        %v1451 = vunpack.c.l.b16 %v1412
        %v1452 = vunpack.c.l.b16 %v1413
        %v1453 = vpack.c.b16 %v1438, %v1437
        %v1454 = vpack.c.b16 %v1440, %v1439
        %v1455 = vpack.c.b16 %v1442, %v1441
        %v1456 = vpack.c.b16 %v1444, %v1443
        %v1457 = vpack.c.b16 %v1446, %v1445
        %v1458 = vpack.c.b16 %v1448, %v1447
        %v1459 = vpack.c.b16 %v1450, %v1449
        %v1460 = vpack.c.b16 %v1452, %v1451
        %1469 = vmatprep.subr.bf16.mxu0 0
        %1470 = vmatpush1.bf16.msra.mxu0 %v1453
        %1471 = vmatprep.subr.bf16.mxu0 0
        %1472 = vmatpush1.bf16.msra.mxu0 %v1454
        %1473 = vmatprep.subr.bf16.mxu0 0
        %1474 = vmatpush1.bf16.msra.mxu0 %v1455
        %1475 = vmatprep.subr.bf16.mxu0 0
        %1476 = vmatpush1.bf16.msra.mxu0 %v1456
        %1477 = vmatprep.subr.bf16.mxu0 0
        %1478 = vmatpush1.bf16.msra.mxu0 %v1457
        %1479 = vmatprep.subr.bf16.mxu0 0
        %1480 = vmatpush1.bf16.msra.mxu0 %v1458
        %1481 = vmatprep.subr.bf16.mxu0 0
        %1482 = vmatpush1.bf16.msra.mxu0 %v1459
        %1483 = vmatprep.subr.bf16.mxu0 0
        %1484 = vmatpush1.bf16.msra.mxu0 %v1460
        %1485 = vmatprep.subr.bf16.mxu0 0
        %1486 = vmatpush1.bf16.msra.mxu0 0
        %1487 = vmatprep.subr.bf16.mxu0 0
        %1488 = vmatpush1.bf16.msra.mxu0 0
        %1489 = vmatprep.subr.bf16.mxu0 0
        %1490 = vmatpush1.bf16.msra.mxu0 0
        %1491 = vmatprep.subr.bf16.mxu0 0
        %1492 = vmatpush1.bf16.msra.mxu0 0
        %1493 = vmatprep.subr.bf16.mxu0 0
        %1494 = vmatpush1.bf16.msra.mxu0 0
        %1495 = vmatprep.subr.bf16.mxu0 0
        %1496 = vmatpush1.bf16.msra.mxu0 0
        %1497 = vmatprep.subr.bf16.mxu0 0
        %1498 = vmatpush1.bf16.msra.mxu0 0
        %1499 = vmatprep.subr.bf16.mxu0 0
        %1500 = vmatpush1.bf16.msra.mxu0 0
        %1501 = vmatprep.mubr.bf16.mxu0 0
        %1502 = vmatmul.mubr.bf16.gmra.mrb[0].mxu0 %v1397
        %v1503 = vpop.f32.mrb[0].mxu0
        %v1504 = vadd.f32 %v1419, %v1503
        %v1505 = vpop.f32.mrb[0].mxu0
        %v1506 = vpop.f32.mrb[0].mxu0
        %v1507 = vpop.f32.mrb[0].mxu0
        %1508 = vdwg.mxu0
        %v1509 = vmax.f32 %v1504, 0.0
        %v1510 = vpack.c.bf16 %v1509, %v1509
        %v1511 = vld [vmem:[%s8] sm:$0xff]
        %v1512 = vld [vmem:[%s8 + $0x8] sm:$0xff]
        %v1513 = vld [vmem:[%s8 + $0x10] sm:$0xff]
        %v1514 = vld [vmem:[%s8 + $0x18] sm:$0xff]
        %v1515 = vld [vmem:[%s8 + $0x20] sm:$0xff]
        %v1516 = vld [vmem:[%s8 + $0x28] sm:$0xff]
        %v1517 = vld [vmem:[%s8 + $0x30] sm:$0xff]
        %v1518 = vld [vmem:[%s8 + $0x38] sm:$0xff]
        %v1519 = vld [vmem:[%s8 + $0x40] sm:$0xff]
        %v1520 = vld [vmem:[%s8 + $0x48] sm:$0xff]
        %v1521 = vld [vmem:[%s8 + $0x50] sm:$0xff]
        %v1522 = vld [vmem:[%s8 + $0x58] sm:$0xff]
        %v1523 = vld [vmem:[%s8 + $0x60] sm:$0xff]
        %v1524 = vld [vmem:[%s8 + $0x68] sm:$0xff]
        %v1525 = vld [vmem:[%s8 + $0x70] sm:$0xff]
        %v1526 = vld [vmem:[%s8 + $0x78] sm:$0xff]
        %v1527 = vld [vmem:[%s9] sm:$0x3]
        %v1529 = vlaneseq
        %v1530 = vshrl.u32 %v1529, 7
        %v1531 = vsub.s32 0, %v1530
        %v1532 = vrot.slane %v1527, %v1531
        %v1533 = vlaneseq
        %v1534 = vshrl.u32 %v1533, 7
        %v1535 = vsub.s32 1, %v1534
        %v1536 = vrot.slane %v1527, %v1535
        %v1555 = vunpack.c.l.b16 %v1511
        %v1556 = vunpack.c.h.b16 %v1511
        %v1557 = vunpack.c.l.b16 %v1512
        %v1558 = vunpack.c.h.b16 %v1512
        %v1559 = vunpack.c.l.b16 %v1513
        %v1560 = vunpack.c.h.b16 %v1513
        %v1561 = vunpack.c.l.b16 %v1514
        %v1562 = vunpack.c.h.b16 %v1514
        %v1563 = vunpack.c.l.b16 %v1515
        %v1564 = vunpack.c.h.b16 %v1515
        %v1565 = vunpack.c.l.b16 %v1516
        %v1566 = vunpack.c.h.b16 %v1516
        %v1567 = vunpack.c.l.b16 %v1517
        %v1568 = vunpack.c.h.b16 %v1517
        %v1569 = vunpack.c.l.b16 %v1518
        %v1570 = vunpack.c.h.b16 %v1518
        %v1571 = vunpack.c.l.b16 %v1519
        %v1572 = vunpack.c.h.b16 %v1519
        %v1573 = vunpack.c.l.b16 %v1520
        %v1574 = vunpack.c.h.b16 %v1520
        %v1575 = vunpack.c.l.b16 %v1521
        %v1576 = vunpack.c.h.b16 %v1521
        %v1577 = vunpack.c.l.b16 %v1522
        %v1578 = vunpack.c.h.b16 %v1522
        %v1579 = vunpack.c.l.b16 %v1523
        %v1580 = vunpack.c.h.b16 %v1523
        %v1581 = vunpack.c.l.b16 %v1524
        %v1582 = vunpack.c.h.b16 %v1524
        %v1583 = vunpack.c.l.b16 %v1525
        %v1584 = vunpack.c.h.b16 %v1525
        %v1585 = vunpack.c.l.b16 %v1526
        %v1586 = vunpack.c.h.b16 %v1526
        %v1587 = vpack.c.b16 %v1557, %v1555
        %v1588 = vpack.c.b16 %v1558, %v1556
        %v1589 = vpack.c.b16 %v1561, %v1559
        %v1590 = vpack.c.b16 %v1562, %v1560
        %v1591 = vpack.c.b16 %v1565, %v1563
        %v1592 = vpack.c.b16 %v1566, %v1564
        %v1593 = vpack.c.b16 %v1569, %v1567
        %v1594 = vpack.c.b16 %v1570, %v1568
        %v1595 = vpack.c.b16 %v1573, %v1571
        %v1596 = vpack.c.b16 %v1574, %v1572
        %v1597 = vpack.c.b16 %v1577, %v1575
        %v1598 = vpack.c.b16 %v1578, %v1576
        %v1599 = vpack.c.b16 %v1581, %v1579
        %v1600 = vpack.c.b16 %v1582, %v1580
        %v1601 = vpack.c.b16 %v1585, %v1583
        %v1602 = vpack.c.b16 %v1586, %v1584
        %1619 = vmatprep.subr.bf16.mxu0 %v1588
        %1620 = vmatpush1.bf16.msra.mxu0 %v1587
        %1621 = vmatprep.subr.bf16.mxu0 %v1590
        %1622 = vmatpush1.bf16.msra.mxu0 %v1589
        %1623 = vmatprep.subr.bf16.mxu0 %v1592
        %1624 = vmatpush1.bf16.msra.mxu0 %v1591
        %1625 = vmatprep.subr.bf16.mxu0 %v1594
        %1626 = vmatpush1.bf16.msra.mxu0 %v1593
        %1627 = vmatprep.subr.bf16.mxu0 %v1596
        %1628 = vmatpush1.bf16.msra.mxu0 %v1595
        %1629 = vmatprep.subr.bf16.mxu0 %v1598
        %1630 = vmatpush1.bf16.msra.mxu0 %v1597
        %1631 = vmatprep.subr.bf16.mxu0 %v1600
        %1632 = vmatpush1.bf16.msra.mxu0 %v1599
        %1633 = vmatprep.subr.bf16.mxu0 %v1602
        %1634 = vmatpush1.bf16.msra.mxu0 %v1601
        %1635 = vmatprep.subr.bf16.mxu0 0
        %1636 = vmatpush1.bf16.msra.mxu0 0
        %1637 = vmatprep.subr.bf16.mxu0 0
        %1638 = vmatpush1.bf16.msra.mxu0 0
        %1639 = vmatprep.subr.bf16.mxu0 0
        %1640 = vmatpush1.bf16.msra.mxu0 0
        %1641 = vmatprep.subr.bf16.mxu0 0
        %1642 = vmatpush1.bf16.msra.mxu0 0
        %1643 = vmatprep.subr.bf16.mxu0 0
        %1644 = vmatpush1.bf16.msra.mxu0 0
        %1645 = vmatprep.subr.bf16.mxu0 0
        %1646 = vmatpush1.bf16.msra.mxu0 0
        %1647 = vmatprep.subr.bf16.mxu0 0
        %1648 = vmatpush1.bf16.msra.mxu0 0
        %1649 = vmatprep.subr.bf16.mxu0 0
        %1650 = vmatpush1.bf16.msra.mxu0 0
        %1651 = vmatprep.mubr.bf16.mxu0 0
        %1652 = vmatmul.mubr.bf16.gmra.mrb[0].mxu0 %v1510
        %v1653 = vpop.f32.mrb[0].mxu0
        %v1654 = vadd.f32 %v1532, %v1653
        %v1655 = vpop.f32.mrb[0].mxu0
        %v1656 = vadd.f32 %v1536, %v1655
        %v1657 = vpop.f32.mrb[0].mxu0
        %v1658 = vpop.f32.mrb[0].mxu0
        %1659 = vdwg.mxu0
        %v1660 = vld [vmem:[%s2] sm:$0x1]
        %v1661 = vld [vmem:[#allocation2] sm:$0x1]
        %v1662 = vmul.f32 %v1656, 0.5
        %v1663 = vmul.f32 %v1662, 1.442695
        %v1664 = vpow.pop %v1663
        %v1665 = vadd.f32 %v1660, %v1661
        %v1667 = vlaneseq
        %v1668 = vshrl.u32 %v1667, 7
        %v1669 = vsub.s32 0, %v1668
        %v1670 = vrot.slane %v1665, %v1669
        %v1672 = vmul.f32 %v1654, %v1670
        %v1673 = vld [vmem:[%s673] sm:$0xff]
        %v1674 = vmul.f32 %v1664, %v1673
        %v1676 = vlaneseq
        %v1677 = vshrl.u32 %v1676, 7
        %v1678 = vsub.s32 0, %v1677
        %v1679 = vrot.slane %v1661, %v1678
        %v1681 = vmul.f32 %v1674, %v1679
        %v1682 = vadd.f32 %v1672, %v1681
        %v1683 = vpack.c.bf16 %v1682, %v1682
        %v1684 = vld [vmem:[%s10] sm:$0xf]
        %v1685 = vld [vmem:[%s10 + $0x4] sm:$0xf]
        %v1686 = vld [vmem:[%s10 + $0x8] sm:$0xf]
        %v1687 = vld [vmem:[%s10 + $0xc] sm:$0xf]
        %v1688 = vld [vmem:[%s10 + $0x10] sm:$0xf]
        %v1689 = vld [vmem:[%s10 + $0x14] sm:$0xf]
        %v1690 = vld [vmem:[%s10 + $0x18] sm:$0xf]
        %v1691 = vld [vmem:[%s10 + $0x1c] sm:$0xf]
        %v1692 = vld [vmem:[%s10 + $0x20] sm:$0xf]
        %v1693 = vld [vmem:[%s10 + $0x24] sm:$0xf]
        %v1694 = vld [vmem:[%s10 + $0x28] sm:$0xf]
        %v1695 = vld [vmem:[%s10 + $0x2c] sm:$0xf]
        %v1696 = vld [vmem:[%s10 + $0x30] sm:$0xf]
        %v1697 = vld [vmem:[%s10 + $0x34] sm:$0xf]
        %v1698 = vld [vmem:[%s10 + $0x38] sm:$0xf]
        %v1699 = vld [vmem:[%s10 + $0x3c] sm:$0xf]
        %v1700 = vld [vmem:[#allocation9] sm:$0x1]
        %v1702 = vlaneseq
        %v1703 = vshrl.u32 %v1702, 7
        %v1704 = vsub.s32 0, %v1703
        %v1705 = vrot.slane %v1700, %v1704
        %v1723 = vunpack.c.l.b16 %v1684
        %v1724 = vunpack.c.l.b16 %v1685
        %v1725 = vunpack.c.l.b16 %v1686
        %v1726 = vunpack.c.l.b16 %v1687
        %v1727 = vunpack.c.l.b16 %v1688
        %v1728 = vunpack.c.l.b16 %v1689
        %v1729 = vunpack.c.l.b16 %v1690
        %v1730 = vunpack.c.l.b16 %v1691
        %v1731 = vunpack.c.l.b16 %v1692
        %v1732 = vunpack.c.l.b16 %v1693
        %v1733 = vunpack.c.l.b16 %v1694
        %v1734 = vunpack.c.l.b16 %v1695
        %v1735 = vunpack.c.l.b16 %v1696
        %v1736 = vunpack.c.l.b16 %v1697
        %v1737 = vunpack.c.l.b16 %v1698
        %v1738 = vunpack.c.l.b16 %v1699
        %v1739 = vpack.c.b16 %v1724, %v1723
        %v1740 = vpack.c.b16 %v1726, %v1725
        %v1741 = vpack.c.b16 %v1728, %v1727
        %v1742 = vpack.c.b16 %v1730, %v1729
        %v1743 = vpack.c.b16 %v1732, %v1731
        %v1744 = vpack.c.b16 %v1734, %v1733
        %v1745 = vpack.c.b16 %v1736, %v1735
        %v1746 = vpack.c.b16 %v1738, %v1737
        %1755 = vmatprep.subr.bf16.mxu0 0
        %1756 = vmatpush1.bf16.msra.mxu0 %v1739
        %1757 = vmatprep.subr.bf16.mxu0 0
        %1758 = vmatpush1.bf16.msra.mxu0 %v1740
        %1759 = vmatprep.subr.bf16.mxu0 0
        %1760 = vmatpush1.bf16.msra.mxu0 %v1741
        %1761 = vmatprep.subr.bf16.mxu0 0
        %1762 = vmatpush1.bf16.msra.mxu0 %v1742
        %1763 = vmatprep.subr.bf16.mxu0 0
        %1764 = vmatpush1.bf16.msra.mxu0 %v1743
        %1765 = vmatprep.subr.bf16.mxu0 0
        %1766 = vmatpush1.bf16.msra.mxu0 %v1744
        %1767 = vmatprep.subr.bf16.mxu0 0
        %1768 = vmatpush1.bf16.msra.mxu0 %v1745
        %1769 = vmatprep.subr.bf16.mxu0 0
        %1770 = vmatpush1.bf16.msra.mxu0 %v1746
        %1771 = vmatprep.subr.bf16.mxu0 0
        %1772 = vmatpush1.bf16.msra.mxu0 0
        %1773 = vmatprep.subr.bf16.mxu0 0
        %1774 = vmatpush1.bf16.msra.mxu0 0
        %1775 = vmatprep.subr.bf16.mxu0 0
        %1776 = vmatpush1.bf16.msra.mxu0 0
        %1777 = vmatprep.subr.bf16.mxu0 0
        %1778 = vmatpush1.bf16.msra.mxu0 0
        %1779 = vmatprep.subr.bf16.mxu0 0
        %1780 = vmatpush1.bf16.msra.mxu0 0
        %1781 = vmatprep.subr.bf16.mxu0 0
        %1782 = vmatpush1.bf16.msra.mxu0 0
        %1783 = vmatprep.subr.bf16.mxu0 0
        %1784 = vmatpush1.bf16.msra.mxu0 0
        %1785 = vmatprep.subr.bf16.mxu0 0
        %1786 = vmatpush1.bf16.msra.mxu0 0
        %1787 = vmatprep.mubr.bf16.mxu0 0
        %1788 = vmatmul.mubr.bf16.gmra.mrb[0].mxu0 %v1683
        %v1789 = vpop.f32.mrb[0].mxu0
        %v1790 = vadd.f32 %v1705, %v1789
        %v1791 = vpop.f32.mrb[0].mxu0
        %v1792 = vpop.f32.mrb[0].mxu0
        %v1793 = vpop.f32.mrb[0].mxu0
        %1794 = vdwg.mxu0
        %v1795 = vmax.f32 %v1790, 0.0
        %v1796 = vpack.c.bf16 %v1795, %v1795
        %v1797 = vld [vmem:[#allocation10] sm:$0xf]
        %v1798 = vld [vmem:[#allocation10 + $0x4] sm:$0xf]
        %v1799 = vld [vmem:[#allocation10 + $0x8] sm:$0xf]
        %v1800 = vld [vmem:[#allocation10 + $0xc] sm:$0xf]
        %v1801 = vld [vmem:[#allocation10 + $0x10] sm:$0xf]
        %v1802 = vld [vmem:[#allocation10 + $0x14] sm:$0xf]
        %v1803 = vld [vmem:[#allocation10 + $0x18] sm:$0xf]
        %v1804 = vld [vmem:[#allocation10 + $0x1c] sm:$0xf]
        %v1805 = vld [vmem:[#allocation10 + $0x20] sm:$0xf]
        %v1806 = vld [vmem:[#allocation10 + $0x24] sm:$0xf]
        %v1807 = vld [vmem:[#allocation10 + $0x28] sm:$0xf]
        %v1808 = vld [vmem:[#allocation10 + $0x2c] sm:$0xf]
        %v1809 = vld [vmem:[#allocation10 + $0x30] sm:$0xf]
        %v1810 = vld [vmem:[#allocation10 + $0x34] sm:$0xf]
        %v1811 = vld [vmem:[#allocation10 + $0x38] sm:$0xf]
        %v1812 = vld [vmem:[#allocation10 + $0x3c] sm:$0xf]
        %v1813 = vld [vmem:[#allocation12] sm:$0x1]
        %v1815 = vlaneseq
        %v1816 = vshrl.u32 %v1815, 7
        %v1817 = vsub.s32 0, %v1816
        %v1818 = vrot.slane %v1813, %v1817
        %v1836 = vunpack.c.l.b16 %v1797
        %v1837 = vunpack.c.l.b16 %v1798
        %v1838 = vunpack.c.l.b16 %v1799
        %v1839 = vunpack.c.l.b16 %v1800
        %v1840 = vunpack.c.l.b16 %v1801
        %v1841 = vunpack.c.l.b16 %v1802
        %v1842 = vunpack.c.l.b16 %v1803
        %v1843 = vunpack.c.l.b16 %v1804
        %v1844 = vunpack.c.l.b16 %v1805
        %v1845 = vunpack.c.l.b16 %v1806
        %v1846 = vunpack.c.l.b16 %v1807
        %v1847 = vunpack.c.l.b16 %v1808
        %v1848 = vunpack.c.l.b16 %v1809
        %v1849 = vunpack.c.l.b16 %v1810
        %v1850 = vunpack.c.l.b16 %v1811
        %v1851 = vunpack.c.l.b16 %v1812
        %v1852 = vpack.c.b16 %v1837, %v1836
        %v1853 = vpack.c.b16 %v1839, %v1838
        %v1854 = vpack.c.b16 %v1841, %v1840
        %v1855 = vpack.c.b16 %v1843, %v1842
        %v1856 = vpack.c.b16 %v1845, %v1844
        %v1857 = vpack.c.b16 %v1847, %v1846
        %v1858 = vpack.c.b16 %v1849, %v1848
        %v1859 = vpack.c.b16 %v1851, %v1850
        %1868 = vmatprep.subr.bf16.mxu0 0
        %1869 = vmatpush1.bf16.msra.mxu0 %v1852
        %1870 = vmatprep.subr.bf16.mxu0 0
        %1871 = vmatpush1.bf16.msra.mxu0 %v1853
        %1872 = vmatprep.subr.bf16.mxu0 0
        %1873 = vmatpush1.bf16.msra.mxu0 %v1854
        %1874 = vmatprep.subr.bf16.mxu0 0
        %1875 = vmatpush1.bf16.msra.mxu0 %v1855
        %1876 = vmatprep.subr.bf16.mxu0 0
        %1877 = vmatpush1.bf16.msra.mxu0 %v1856
        %1878 = vmatprep.subr.bf16.mxu0 0
        %1879 = vmatpush1.bf16.msra.mxu0 %v1857
        %1880 = vmatprep.subr.bf16.mxu0 0
        %1881 = vmatpush1.bf16.msra.mxu0 %v1858
        %1882 = vmatprep.subr.bf16.mxu0 0
        %1883 = vmatpush1.bf16.msra.mxu0 %v1859
        %1884 = vmatprep.subr.bf16.mxu0 0
        %1885 = vmatpush1.bf16.msra.mxu0 0
        %1886 = vmatprep.subr.bf16.mxu0 0
        %1887 = vmatpush1.bf16.msra.mxu0 0
        %1888 = vmatprep.subr.bf16.mxu0 0
        %1889 = vmatpush1.bf16.msra.mxu0 0
        %1890 = vmatprep.subr.bf16.mxu0 0
        %1891 = vmatpush1.bf16.msra.mxu0 0
        %1892 = vmatprep.subr.bf16.mxu0 0
        %1893 = vmatpush1.bf16.msra.mxu0 0
        %1894 = vmatprep.subr.bf16.mxu0 0
        %1895 = vmatpush1.bf16.msra.mxu0 0
        %1896 = vmatprep.subr.bf16.mxu0 0
        %1897 = vmatpush1.bf16.msra.mxu0 0
        %1898 = vmatprep.subr.bf16.mxu0 0
        %1899 = vmatpush1.bf16.msra.mxu0 0
        %1900 = vmatprep.mubr.bf16.mxu0 0
        %1901 = vmatmul.mubr.bf16.gmra.mrb[0].mxu0 %v1796
        %v1902 = vpop.f32.mrb[0].mxu0
        %v1903 = vadd.f32 %v1818, %v1902
        %v1904 = vpop.f32.mrb[0].mxu0
        %v1905 = vpop.f32.mrb[0].mxu0
        %v1906 = vpop.f32.mrb[0].mxu0
        %1907 = vdwg.mxu0
        %v1908 = vmax.f32 %v1903, 0.0
        %v1909 = vpack.c.bf16 %v1908, %v1908
        %v1910 = vld [vmem:[%s14] sm:$0xff]
        %v1911 = vld [vmem:[%s14 + $0x8] sm:$0xff]
        %v1912 = vld [vmem:[%s14 + $0x10] sm:$0xff]
        %v1913 = vld [vmem:[%s14 + $0x18] sm:$0xff]
        %v1914 = vld [vmem:[%s14 + $0x20] sm:$0xff]
        %v1915 = vld [vmem:[%s14 + $0x28] sm:$0xff]
        %v1916 = vld [vmem:[%s14 + $0x30] sm:$0xff]
        %v1917 = vld [vmem:[%s14 + $0x38] sm:$0xff]
        %v1918 = vld [vmem:[%s14 + $0x40] sm:$0xff]
        %v1919 = vld [vmem:[%s14 + $0x48] sm:$0xff]
        %v1920 = vld [vmem:[%s14 + $0x50] sm:$0xff]
        %v1921 = vld [vmem:[%s14 + $0x58] sm:$0xff]
        %v1922 = vld [vmem:[%s14 + $0x60] sm:$0xff]
        %v1923 = vld [vmem:[%s14 + $0x68] sm:$0xff]
        %v1924 = vld [vmem:[%s14 + $0x70] sm:$0xff]
        %v1925 = vld [vmem:[%s14 + $0x78] sm:$0xff]
        %v1926 = vld [vmem:[%s14 + $0x80] sm:$0xff]
        %v1927 = vld [vmem:[%s14 + $0x88] sm:$0xff]
        %v1928 = vld [vmem:[%s14 + $0x90] sm:$0xff]
        %v1929 = vld [vmem:[%s14 + $0x98] sm:$0xff]
        %v1930 = vld [vmem:[%s14 + $0xa0] sm:$0xff]
        %v1931 = vld [vmem:[%s14 + $0xa8] sm:$0xff]
        %v1932 = vld [vmem:[%s14 + $0xb0] sm:$0xff]
        %v1933 = vld [vmem:[%s14 + $0xb8] sm:$0xff]
        %v1934 = vld [vmem:[%s14 + $0xc0] sm:$0xff]
        %v1935 = vld [vmem:[%s14 + $0xc8] sm:$0xff]
        %v1936 = vld [vmem:[%s14 + $0xd0] sm:$0xff]
        %v1937 = vld [vmem:[%s14 + $0xd8] sm:$0xff]
        %v1938 = vld [vmem:[%s14 + $0xe0] sm:$0xff]
        %v1939 = vld [vmem:[%s14 + $0xe8] sm:$0xff]
        %v1940 = vld [vmem:[%s14 + $0xf0] sm:$0xff]
        %v1941 = vld [vmem:[%s14 + $0xf8] sm:$0xff]
        %v1942 = vld [vmem:[%s14 + $0x100] sm:$0xff]
        %v1943 = vld [vmem:[%s14 + $0x108] sm:$0xff]
        %v1944 = vld [vmem:[%s14 + $0x110] sm:$0xff]
        %v1945 = vld [vmem:[%s14 + $0x118] sm:$0xff]
        %v1946 = vld [vmem:[%s14 + $0x120] sm:$0xff]
        %v1947 = vld [vmem:[%s14 + $0x128] sm:$0xff]
        %v1948 = vld [vmem:[%s14 + $0x130] sm:$0xff]
        %v1949 = vld [vmem:[%s14 + $0x138] sm:$0xff]
        %v1950 = vld [vmem:[%s14 + $0x140] sm:$0xff]
        %v1951 = vld [vmem:[%s14 + $0x148] sm:$0xff]
        %v1952 = vld [vmem:[%s14 + $0x150] sm:$0xff]
        %v1953 = vld [vmem:[%s14 + $0x158] sm:$0xff]
        %v1954 = vld [vmem:[%s14 + $0x160] sm:$0xff]
        %v1955 = vld [vmem:[%s14 + $0x168] sm:$0xff]
        %v1956 = vld [vmem:[%s14 + $0x170] sm:$0xff]
        %v1957 = vld [vmem:[%s14 + $0x178] sm:$0xff]
        %v1958 = vld [vmem:[%s14 + $0x180] sm:$0xff]
        %v1959 = vld [vmem:[%s14 + $0x188] sm:$0xff]
        %v1960 = vld [vmem:[%s14 + $0x190] sm:$0xff]
        %v1961 = vld [vmem:[%s14 + $0x198] sm:$0xff]
        %v1962 = vld [vmem:[%s14 + $0x1a0] sm:$0xff]
        %v1963 = vld [vmem:[%s14 + $0x1a8] sm:$0xff]
        %v1964 = vld [vmem:[%s14 + $0x1b0] sm:$0xff]
        %v1965 = vld [vmem:[%s14 + $0x1b8] sm:$0xff]
        %v1966 = vld [vmem:[%s14 + $0x1c0] sm:$0xff]
        %v1967 = vld [vmem:[%s14 + $0x1c8] sm:$0xff]
        %v1968 = vld [vmem:[%s14 + $0x1d0] sm:$0xff]
        %v1969 = vld [vmem:[%s14 + $0x1d8] sm:$0xff]
        %v1970 = vld [vmem:[%s14 + $0x1e0] sm:$0xff]
        %v1971 = vld [vmem:[%s14 + $0x1e8] sm:$0xff]
        %v1972 = vld [vmem:[%s14 + $0x1f0] sm:$0xff]
        %v1973 = vld [vmem:[%s14 + $0x1f8] sm:$0xff]
        %v1974 = vld [vmem:[#allocation13] sm:$0xff]
        %v1976 = vlaneseq
        %v1977 = vshrl.u32 %v1976, 7
        %v1978 = vsub.s32 0, %v1977
        %v1979 = vrot.slane %v1974, %v1978
        %v1980 = vlaneseq
        %v1981 = vshrl.u32 %v1980, 7
        %v1982 = vsub.s32 1, %v1981
        %v1983 = vrot.slane %v1974, %v1982
        %v1984 = vlaneseq
        %v1985 = vshrl.u32 %v1984, 7
        %v1986 = vsub.s32 2, %v1985
        %v1987 = vrot.slane %v1974, %v1986
        %v1988 = vlaneseq
        %v1989 = vshrl.u32 %v1988, 7
        %v1990 = vsub.s32 3, %v1989
        %v1991 = vrot.slane %v1974, %v1990
        %v1992 = vlaneseq
        %v1993 = vshrl.u32 %v1992, 7
        %v1994 = vsub.s32 4, %v1993
        %v1995 = vrot.slane %v1974, %v1994
        %v1996 = vlaneseq
        %v1997 = vshrl.u32 %v1996, 7
        %v1998 = vsub.s32 5, %v1997
        %v1999 = vrot.slane %v1974, %v1998
        %v2000 = vlaneseq
        %v2001 = vshrl.u32 %v2000, 7
        %v2002 = vsub.s32 6, %v2001
        %v2003 = vrot.slane %v1974, %v2002
        %v2004 = vlaneseq
        %v2005 = vshrl.u32 %v2004, 7
        %v2006 = vsub.s32 7, %v2005
        %v2007 = vrot.slane %v1974, %v2006
        %v2080 = vunpack.c.l.b16 %v1910
        %v2081 = vunpack.c.h.b16 %v1910
        %v2082 = vunpack.c.l.b16 %v1911
        %v2083 = vunpack.c.h.b16 %v1911
        %v2084 = vunpack.c.l.b16 %v1912
        %v2085 = vunpack.c.h.b16 %v1912
        %v2086 = vunpack.c.l.b16 %v1913
        %v2087 = vunpack.c.h.b16 %v1913
        %v2088 = vunpack.c.l.b16 %v1914
        %v2089 = vunpack.c.h.b16 %v1914
        %v2090 = vunpack.c.l.b16 %v1915
        %v2091 = vunpack.c.h.b16 %v1915
        %v2092 = vunpack.c.l.b16 %v1916
        %v2093 = vunpack.c.h.b16 %v1916
        %v2094 = vunpack.c.l.b16 %v1917
        %v2095 = vunpack.c.h.b16 %v1917
        %v2096 = vunpack.c.l.b16 %v1918
        %v2097 = vunpack.c.h.b16 %v1918
        %v2098 = vunpack.c.l.b16 %v1919
        %v2099 = vunpack.c.h.b16 %v1919
        %v2100 = vunpack.c.l.b16 %v1920
        %v2101 = vunpack.c.h.b16 %v1920
        %v2102 = vunpack.c.l.b16 %v1921
        %v2103 = vunpack.c.h.b16 %v1921
        %v2104 = vunpack.c.l.b16 %v1922
        %v2105 = vunpack.c.h.b16 %v1922
        %v2106 = vunpack.c.l.b16 %v1923
        %v2107 = vunpack.c.h.b16 %v1923
        %v2108 = vunpack.c.l.b16 %v1924
        %v2109 = vunpack.c.h.b16 %v1924
        %v2110 = vunpack.c.l.b16 %v1925
        %v2111 = vunpack.c.h.b16 %v1925
        %v2112 = vunpack.c.l.b16 %v1926
        %v2113 = vunpack.c.h.b16 %v1926
        %v2114 = vunpack.c.l.b16 %v1927
        %v2115 = vunpack.c.h.b16 %v1927
        %v2116 = vunpack.c.l.b16 %v1928
        %v2117 = vunpack.c.h.b16 %v1928
        %v2118 = vunpack.c.l.b16 %v1929
        %v2119 = vunpack.c.h.b16 %v1929
        %v2120 = vunpack.c.l.b16 %v1930
        %v2121 = vunpack.c.h.b16 %v1930
        %v2122 = vunpack.c.l.b16 %v1931
        %v2123 = vunpack.c.h.b16 %v1931
        %v2124 = vunpack.c.l.b16 %v1932
        %v2125 = vunpack.c.h.b16 %v1932
        %v2126 = vunpack.c.l.b16 %v1933
        %v2127 = vunpack.c.h.b16 %v1933
        %v2128 = vunpack.c.l.b16 %v1934
        %v2129 = vunpack.c.h.b16 %v1934
        %v2130 = vunpack.c.l.b16 %v1935
        %v2131 = vunpack.c.h.b16 %v1935
        %v2132 = vunpack.c.l.b16 %v1936
        %v2133 = vunpack.c.h.b16 %v1936
        %v2134 = vunpack.c.l.b16 %v1937
        %v2135 = vunpack.c.h.b16 %v1937
        %v2136 = vunpack.c.l.b16 %v1938
        %v2137 = vunpack.c.h.b16 %v1938
        %v2138 = vunpack.c.l.b16 %v1939
        %v2139 = vunpack.c.h.b16 %v1939
        %v2140 = vunpack.c.l.b16 %v1940
        %v2141 = vunpack.c.h.b16 %v1940
        %v2142 = vunpack.c.l.b16 %v1941
        %v2143 = vunpack.c.h.b16 %v1941
        %v2144 = vunpack.c.l.b16 %v1942
        %v2145 = vunpack.c.h.b16 %v1942
        %v2146 = vunpack.c.l.b16 %v1943
        %v2147 = vunpack.c.h.b16 %v1943
        %v2148 = vunpack.c.l.b16 %v1944
        %v2149 = vunpack.c.h.b16 %v1944
        %v2150 = vunpack.c.l.b16 %v1945
        %v2151 = vunpack.c.h.b16 %v1945
        %v2152 = vunpack.c.l.b16 %v1946
        %v2153 = vunpack.c.h.b16 %v1946
        %v2154 = vunpack.c.l.b16 %v1947
        %v2155 = vunpack.c.h.b16 %v1947
        %v2156 = vunpack.c.l.b16 %v1948
        %v2157 = vunpack.c.h.b16 %v1948
        %v2158 = vunpack.c.l.b16 %v1949
        %v2159 = vunpack.c.h.b16 %v1949
        %v2160 = vunpack.c.l.b16 %v1950
        %v2161 = vunpack.c.h.b16 %v1950
        %v2162 = vunpack.c.l.b16 %v1951
        %v2163 = vunpack.c.h.b16 %v1951
        %v2164 = vunpack.c.l.b16 %v1952
        %v2165 = vunpack.c.h.b16 %v1952
        %v2166 = vunpack.c.l.b16 %v1953
        %v2167 = vunpack.c.h.b16 %v1953
        %v2168 = vunpack.c.l.b16 %v1954
        %v2169 = vunpack.c.h.b16 %v1954
        %v2170 = vunpack.c.l.b16 %v1955
        %v2171 = vunpack.c.h.b16 %v1955
        %v2172 = vunpack.c.l.b16 %v1956
        %v2173 = vunpack.c.h.b16 %v1956
        %v2174 = vunpack.c.l.b16 %v1957
        %v2175 = vunpack.c.h.b16 %v1957
        %v2176 = vunpack.c.l.b16 %v1958
        %v2177 = vunpack.c.h.b16 %v1958
        %v2178 = vunpack.c.l.b16 %v1959
        %v2179 = vunpack.c.h.b16 %v1959
        %v2180 = vunpack.c.l.b16 %v1960
        %v2181 = vunpack.c.h.b16 %v1960
        %v2182 = vunpack.c.l.b16 %v1961
        %v2183 = vunpack.c.h.b16 %v1961
        %v2184 = vunpack.c.l.b16 %v1962
        %v2185 = vunpack.c.h.b16 %v1962
        %v2186 = vunpack.c.l.b16 %v1963
        %v2187 = vunpack.c.h.b16 %v1963
        %v2188 = vunpack.c.l.b16 %v1964
        %v2189 = vunpack.c.h.b16 %v1964
        %v2190 = vunpack.c.l.b16 %v1965
        %v2191 = vunpack.c.h.b16 %v1965
        %v2192 = vunpack.c.l.b16 %v1966
        %v2193 = vunpack.c.h.b16 %v1966
        %v2194 = vunpack.c.l.b16 %v1967
        %v2195 = vunpack.c.h.b16 %v1967
        %v2196 = vunpack.c.l.b16 %v1968
        %v2197 = vunpack.c.h.b16 %v1968
        %v2198 = vunpack.c.l.b16 %v1969
        %v2199 = vunpack.c.h.b16 %v1969
        %v2200 = vunpack.c.l.b16 %v1970
        %v2201 = vunpack.c.h.b16 %v1970
        %v2202 = vunpack.c.l.b16 %v1971
        %v2203 = vunpack.c.h.b16 %v1971
        %v2204 = vunpack.c.l.b16 %v1972
        %v2205 = vunpack.c.h.b16 %v1972
        %v2206 = vunpack.c.l.b16 %v1973
        %v2207 = vunpack.c.h.b16 %v1973
        %v2208 = vpack.c.b16 %v2088, %v2080
        %v2209 = vpack.c.b16 %v2089, %v2081
        %v2210 = vpack.c.b16 %v2090, %v2082
        %v2211 = vpack.c.b16 %v2091, %v2083
        %v2212 = vpack.c.b16 %v2092, %v2084
        %v2213 = vpack.c.b16 %v2093, %v2085
        %v2214 = vpack.c.b16 %v2094, %v2086
        %v2215 = vpack.c.b16 %v2095, %v2087
        %v2216 = vpack.c.b16 %v2104, %v2096
        %v2217 = vpack.c.b16 %v2105, %v2097
        %v2218 = vpack.c.b16 %v2106, %v2098
        %v2219 = vpack.c.b16 %v2107, %v2099
        %v2220 = vpack.c.b16 %v2108, %v2100
        %v2221 = vpack.c.b16 %v2109, %v2101
        %v2222 = vpack.c.b16 %v2110, %v2102
        %v2223 = vpack.c.b16 %v2111, %v2103
        %v2224 = vpack.c.b16 %v2120, %v2112
        %v2225 = vpack.c.b16 %v2121, %v2113
        %v2226 = vpack.c.b16 %v2122, %v2114
        %v2227 = vpack.c.b16 %v2123, %v2115
        %v2228 = vpack.c.b16 %v2124, %v2116
        %v2229 = vpack.c.b16 %v2125, %v2117
        %v2230 = vpack.c.b16 %v2126, %v2118
        %v2231 = vpack.c.b16 %v2127, %v2119
        %v2232 = vpack.c.b16 %v2136, %v2128
        %v2233 = vpack.c.b16 %v2137, %v2129
        %v2234 = vpack.c.b16 %v2138, %v2130
        %v2235 = vpack.c.b16 %v2139, %v2131
        %v2236 = vpack.c.b16 %v2140, %v2132
        %v2237 = vpack.c.b16 %v2141, %v2133
        %v2238 = vpack.c.b16 %v2142, %v2134
        %v2239 = vpack.c.b16 %v2143, %v2135
        %v2240 = vpack.c.b16 %v2152, %v2144
        %v2241 = vpack.c.b16 %v2153, %v2145
        %v2242 = vpack.c.b16 %v2154, %v2146
        %v2243 = vpack.c.b16 %v2155, %v2147
        %v2244 = vpack.c.b16 %v2156, %v2148
        %v2245 = vpack.c.b16 %v2157, %v2149
        %v2246 = vpack.c.b16 %v2158, %v2150
        %v2247 = vpack.c.b16 %v2159, %v2151
        %v2248 = vpack.c.b16 %v2168, %v2160
        %v2249 = vpack.c.b16 %v2169, %v2161
        %v2250 = vpack.c.b16 %v2170, %v2162
        %v2251 = vpack.c.b16 %v2171, %v2163
        %v2252 = vpack.c.b16 %v2172, %v2164
        %v2253 = vpack.c.b16 %v2173, %v2165
        %v2254 = vpack.c.b16 %v2174, %v2166
        %v2255 = vpack.c.b16 %v2175, %v2167
        %v2256 = vpack.c.b16 %v2184, %v2176
        %v2257 = vpack.c.b16 %v2185, %v2177
        %v2258 = vpack.c.b16 %v2186, %v2178
        %v2259 = vpack.c.b16 %v2187, %v2179
        %v2260 = vpack.c.b16 %v2188, %v2180
        %v2261 = vpack.c.b16 %v2189, %v2181
        %v2262 = vpack.c.b16 %v2190, %v2182
        %v2263 = vpack.c.b16 %v2191, %v2183
        %v2264 = vpack.c.b16 %v2200, %v2192
        %v2265 = vpack.c.b16 %v2201, %v2193
        %v2266 = vpack.c.b16 %v2202, %v2194
        %v2267 = vpack.c.b16 %v2203, %v2195
        %v2268 = vpack.c.b16 %v2204, %v2196
        %v2269 = vpack.c.b16 %v2205, %v2197
        %v2270 = vpack.c.b16 %v2206, %v2198
        %v2271 = vpack.c.b16 %v2207, %v2199
        %2336 = vmatprep.subr.bf16.mxu0 %v2209
        %2337 = vmatpush1.bf16.msra.mxu0 %v2208
        %2338 = vmatprep.subr.bf16.mxu0 %v2217
        %2339 = vmatpush1.bf16.msra.mxu0 %v2216
        %2340 = vmatprep.subr.bf16.mxu0 %v2225
        %2341 = vmatpush1.bf16.msra.mxu0 %v2224
        %2342 = vmatprep.subr.bf16.mxu0 %v2233
        %2343 = vmatpush1.bf16.msra.mxu0 %v2232
        %2344 = vmatprep.subr.bf16.mxu0 %v2241
        %2345 = vmatpush1.bf16.msra.mxu0 %v2240
        %2346 = vmatprep.subr.bf16.mxu0 %v2249
        %2347 = vmatpush1.bf16.msra.mxu0 %v2248
        %2348 = vmatprep.subr.bf16.mxu0 %v2257
        %2349 = vmatpush1.bf16.msra.mxu0 %v2256
        %2350 = vmatprep.subr.bf16.mxu0 %v2265
        %2351 = vmatpush1.bf16.msra.mxu0 %v2264
        %2352 = vmatprep.subr.bf16.mxu0 0
        %2353 = vmatpush1.bf16.msra.mxu0 0
        %2354 = vmatprep.subr.bf16.mxu0 0
        %2355 = vmatpush1.bf16.msra.mxu0 0
        %2356 = vmatprep.subr.bf16.mxu0 0
        %2357 = vmatpush1.bf16.msra.mxu0 0
        %2358 = vmatprep.subr.bf16.mxu0 0
        %2359 = vmatpush1.bf16.msra.mxu0 0
        %2360 = vmatprep.subr.bf16.mxu0 0
        %2361 = vmatpush1.bf16.msra.mxu0 0
        %2362 = vmatprep.subr.bf16.mxu0 0
        %2363 = vmatpush1.bf16.msra.mxu0 0
        %2364 = vmatprep.subr.bf16.mxu0 0
        %2365 = vmatpush1.bf16.msra.mxu0 0
        %2366 = vmatprep.subr.bf16.mxu0 0
        %2367 = vmatpush1.bf16.msra.mxu0 0
        %2368 = vmatprep.mubr.bf16.mxu0 0
        %2369 = vmatmul.mubr.bf16.gmra.mrb[0].mxu0 %v1909
        %v2370 = vpop.f32.mrb[0].mxu0
        %v2371 = vadd.f32 %v1979, %v2370
        %v2372 = vpop.f32.mrb[0].mxu0
        %v2373 = vadd.f32 %v1983, %v2372
        %v2374 = vpop.f32.mrb[0].mxu0
        %v2375 = vpop.f32.mrb[0].mxu0
        %2376 = vdwg.mxu0
        %2377 = vmatprep.subr.bf16.mxu0 %v2211
        %2378 = vmatpush1.bf16.msra.mxu0 %v2210
        %2379 = vmatprep.subr.bf16.mxu0 %v2219
        %2380 = vmatpush1.bf16.msra.mxu0 %v2218
        %2381 = vmatprep.subr.bf16.mxu0 %v2227
        %2382 = vmatpush1.bf16.msra.mxu0 %v2226
        %2383 = vmatprep.subr.bf16.mxu0 %v2235
        %2384 = vmatpush1.bf16.msra.mxu0 %v2234
        %2385 = vmatprep.subr.bf16.mxu0 %v2243
        %2386 = vmatpush1.bf16.msra.mxu0 %v2242
        %2387 = vmatprep.subr.bf16.mxu0 %v2251
        %2388 = vmatpush1.bf16.msra.mxu0 %v2250
        %2389 = vmatprep.subr.bf16.mxu0 %v2259
        %2390 = vmatpush1.bf16.msra.mxu0 %v2258
        %2391 = vmatprep.subr.bf16.mxu0 %v2267
        %2392 = vmatpush1.bf16.msra.mxu0 %v2266
        %2393 = vmatprep.subr.bf16.mxu0 0
        %2394 = vmatpush1.bf16.msra.mxu0 0
        %2395 = vmatprep.subr.bf16.mxu0 0
        %2396 = vmatpush1.bf16.msra.mxu0 0
        %2397 = vmatprep.subr.bf16.mxu0 0
        %2398 = vmatpush1.bf16.msra.mxu0 0
        %2399 = vmatprep.subr.bf16.mxu0 0
        %2400 = vmatpush1.bf16.msra.mxu0 0
        %2401 = vmatprep.subr.bf16.mxu0 0
        %2402 = vmatpush1.bf16.msra.mxu0 0
        %2403 = vmatprep.subr.bf16.mxu0 0
        %2404 = vmatpush1.bf16.msra.mxu0 0
        %2405 = vmatprep.subr.bf16.mxu0 0
        %2406 = vmatpush1.bf16.msra.mxu0 0
        %2407 = vmatprep.subr.bf16.mxu0 0
        %2408 = vmatpush1.bf16.msra.mxu0 0
        %2409 = vmatprep.mubr.bf16.mxu0 0
        %2410 = vmatmul.mubr.bf16.gmra.mrb[0].mxu0 %v1909
        %v2411 = vpop.f32.mrb[0].mxu0
        %v2412 = vadd.f32 %v1987, %v2411
        %v2413 = vpop.f32.mrb[0].mxu0
        %v2414 = vadd.f32 %v1991, %v2413
        %v2415 = vpop.f32.mrb[0].mxu0
        %v2416 = vpop.f32.mrb[0].mxu0
        %2417 = vdwg.mxu0
        %2418 = vmatprep.subr.bf16.mxu0 %v2213
        %2419 = vmatpush1.bf16.msra.mxu0 %v2212
        %2420 = vmatprep.subr.bf16.mxu0 %v2221
        %2421 = vmatpush1.bf16.msra.mxu0 %v2220
        %2422 = vmatprep.subr.bf16.mxu0 %v2229
        %2423 = vmatpush1.bf16.msra.mxu0 %v2228
        %2424 = vmatprep.subr.bf16.mxu0 %v2237
        %2425 = vmatpush1.bf16.msra.mxu0 %v2236
        %2426 = vmatprep.subr.bf16.mxu0 %v2245
        %2427 = vmatpush1.bf16.msra.mxu0 %v2244
        %2428 = vmatprep.subr.bf16.mxu0 %v2253
        %2429 = vmatpush1.bf16.msra.mxu0 %v2252
        %2430 = vmatprep.subr.bf16.mxu0 %v2261
        %2431 = vmatpush1.bf16.msra.mxu0 %v2260
        %2432 = vmatprep.subr.bf16.mxu0 %v2269
        %2433 = vmatpush1.bf16.msra.mxu0 %v2268
        %2434 = vmatprep.subr.bf16.mxu0 0
        %2435 = vmatpush1.bf16.msra.mxu0 0
        %2436 = vmatprep.subr.bf16.mxu0 0
        %2437 = vmatpush1.bf16.msra.mxu0 0
        %2438 = vmatprep.subr.bf16.mxu0 0
        %2439 = vmatpush1.bf16.msra.mxu0 0
        %2440 = vmatprep.subr.bf16.mxu0 0
        %2441 = vmatpush1.bf16.msra.mxu0 0
        %2442 = vmatprep.subr.bf16.mxu0 0
        %2443 = vmatpush1.bf16.msra.mxu0 0
        %2444 = vmatprep.subr.bf16.mxu0 0
        %2445 = vmatpush1.bf16.msra.mxu0 0
        %2446 = vmatprep.subr.bf16.mxu0 0
        %2447 = vmatpush1.bf16.msra.mxu0 0
        %2448 = vmatprep.subr.bf16.mxu0 0
        %2449 = vmatpush1.bf16.msra.mxu0 0
        %2450 = vmatprep.mubr.bf16.mxu0 0
        %2451 = vmatmul.mubr.bf16.gmra.mrb[0].mxu0 %v1909
        %v2452 = vpop.f32.mrb[0].mxu0
        %v2453 = vadd.f32 %v1995, %v2452
        %v2454 = vpop.f32.mrb[0].mxu0
        %v2455 = vadd.f32 %v1999, %v2454
        %v2456 = vpop.f32.mrb[0].mxu0
        %v2457 = vpop.f32.mrb[0].mxu0
        %2458 = vdwg.mxu0
        %2459 = vmatprep.subr.bf16.mxu0 %v2215
        %2460 = vmatpush1.bf16.msra.mxu0 %v2214
        %2461 = vmatprep.subr.bf16.mxu0 %v2223
        %2462 = vmatpush1.bf16.msra.mxu0 %v2222
        %2463 = vmatprep.subr.bf16.mxu0 %v2231
        %2464 = vmatpush1.bf16.msra.mxu0 %v2230
        %2465 = vmatprep.subr.bf16.mxu0 %v2239
        %2466 = vmatpush1.bf16.msra.mxu0 %v2238
        %2467 = vmatprep.subr.bf16.mxu0 %v2247
        %2468 = vmatpush1.bf16.msra.mxu0 %v2246
        %2469 = vmatprep.subr.bf16.mxu0 %v2255
        %2470 = vmatpush1.bf16.msra.mxu0 %v2254
        %2471 = vmatprep.subr.bf16.mxu0 %v2263
        %2472 = vmatpush1.bf16.msra.mxu0 %v2262
        %2473 = vmatprep.subr.bf16.mxu0 %v2271
        %2474 = vmatpush1.bf16.msra.mxu0 %v2270
        %2475 = vmatprep.subr.bf16.mxu0 0
        %2476 = vmatpush1.bf16.msra.mxu0 0
        %2477 = vmatprep.subr.bf16.mxu0 0
        %2478 = vmatpush1.bf16.msra.mxu0 0
        %2479 = vmatprep.subr.bf16.mxu0 0
        %2480 = vmatpush1.bf16.msra.mxu0 0
        %2481 = vmatprep.subr.bf16.mxu0 0
        %2482 = vmatpush1.bf16.msra.mxu0 0
        %2483 = vmatprep.subr.bf16.mxu0 0
        %2484 = vmatpush1.bf16.msra.mxu0 0
        %2485 = vmatprep.subr.bf16.mxu0 0
        %2486 = vmatpush1.bf16.msra.mxu0 0
        %2487 = vmatprep.subr.bf16.mxu0 0
        %2488 = vmatpush1.bf16.msra.mxu0 0
        %2489 = vmatprep.subr.bf16.mxu0 0
        %2490 = vmatpush1.bf16.msra.mxu0 0
        %2491 = vmatprep.mubr.bf16.mxu0 0
        %2492 = vmatmul.mubr.bf16.gmra.mrb[0].mxu0 %v1909
        %v2493 = vpop.f32.mrb[0].mxu0
        %v2494 = vadd.f32 %v2003, %v2493
        %v2495 = vpop.f32.mrb[0].mxu0
        %v2496 = vadd.f32 %v2007, %v2495
        %v2497 = vpop.f32.mrb[0].mxu0
        %v2498 = vpop.f32.mrb[0].mxu0
        %2499 = vdwg.mxu0
        %v2500 = vxor.u32 %v2371, 2147483648
        %v2501 = vxor.u32 %v2373, 2147483648
        %v2502 = vxor.u32 %v2412, 2147483648
        %v2503 = vxor.u32 %v2414, 2147483648
        %v2504 = vxor.u32 %v2453, 2147483648
        %v2505 = vxor.u32 %v2455, 2147483648
        %v2506 = vxor.u32 %v2494, 2147483648
        %v2507 = vxor.u32 %v2496, 2147483648
        %v2508 = vmul.f32 %v2500, 1.442695
        %v2509 = vpow.pop %v2508
        %v2510 = vmul.f32 %v2501, 1.442695
        %v2511 = vpow.pop %v2510
        %v2512 = vmul.f32 %v2502, 1.442695
        %v2513 = vpow.pop %v2512
        %v2514 = vmul.f32 %v2503, 1.442695
        %v2515 = vpow.pop %v2514
        %v2516 = vmul.f32 %v2504, 1.442695
        %v2517 = vpow.pop %v2516
        %v2518 = vmul.f32 %v2505, 1.442695
        %v2519 = vpow.pop %v2518
        %v2520 = vmul.f32 %v2506, 1.442695
        %v2521 = vpow.pop %v2520
        %v2522 = vmul.f32 %v2507, 1.442695
        %v2523 = vpow.pop %v2522
        %v2524 = vadd.f32 %v2509, 1.0
        %v2525 = vadd.f32 %v2511, 1.0
        %v2526 = vadd.f32 %v2513, 1.0
        %v2527 = vadd.f32 %v2515, 1.0
        %v2528 = vadd.f32 %v2517, 1.0
        %v2529 = vadd.f32 %v2519, 1.0
        %v2530 = vadd.f32 %v2521, 1.0
        %v2531 = vadd.f32 %v2523, 1.0
        %v2532 = vrcp.pop %v2524
        %v2533 = vmul.f32 1.0, %v2532
        %v2534 = vrcp.pop %v2525
        %v2535 = vmul.f32 1.0, %v2534
        %v2536 = vrcp.pop %v2526
        %v2537 = vmul.f32 1.0, %v2536
        %v2538 = vrcp.pop %v2527
        %v2539 = vmul.f32 1.0, %v2538
        %v2540 = vrcp.pop %v2528
        %v2541 = vmul.f32 1.0, %v2540
        %v2542 = vrcp.pop %v2529
        %v2543 = vmul.f32 1.0, %v2542
        %v2544 = vrcp.pop %v2530
        %v2545 = vmul.f32 1.0, %v2544
        %v2546 = vrcp.pop %v2531
        %v2547 = vmul.f32 1.0, %v2546
        %2548 = vst [vmem:[%s678] sm:$0xff] %v2533
        %2549 = vst [vmem:[%s678 + $0x8] sm:$0xff] %v2535
        %2550 = vst [vmem:[%s678 + $0x10] sm:$0xff] %v2537
        %2551 = vst [vmem:[%s678 + $0x18] sm:$0xff] %v2539
        %2552 = vst [vmem:[%s678 + $0x20] sm:$0xff] %v2541
        %2553 = vst [vmem:[%s678 + $0x28] sm:$0xff] %v2543
        %2554 = vst [vmem:[%s678 + $0x30] sm:$0xff] %v2545
        %2555 = vst [vmem:[%s678 + $0x38] sm:$0xff] %v2547
        %2556 = vst [vmem:[%s683] sm:$0xff] %v1654
        %2557 = vst [vmem:[%s683 + $0x8] sm:$0xff] %v1656
        %2558 = vst [vmem:[%s683 + $0x10] sm:$0xff] %v1682
        %p2559 = scmp.lt.s32.totalorder %s34, 1
        %s2560 = scalar_select %p2559, %s34, 1
        %s2561 = smul.addr %s2560, 8
        %s2562 = smul.addr %s2561, 8
        %s2563 = scalar_lea.vmem %s16, %s2562
        %p2564 = scmp.lt.s32.totalorder %s34, 1
        %s2565 = scalar_select %p2564, %s34, 1
        %s2566 = smul.addr %s2565, 3
        %s2567 = smul.addr %s2566, 8
        %s2568 = scalar_lea.vmem %s17, %s2567
        // Predicated region
        $region117: #{vae_forward.1} parent=83 // pred_check
          %p2569 = pneg %p398
        $region118: #{vae_forward.1} parent=83 // pred_check_branch
          %2571 = sbr.rel (%p2569) target = $region120
        $region119: #{vae_forward.1} parent=83 // pred_region
          _
        $region120: #{vae_forward.1} parent=83 // pred_fallthru
          _
        // Predicated region
        $region121: #{vae_forward.1} parent=83 // pred_check
          %p2572 = pneg %p424
        $region122: #{vae_forward.1} parent=83 // pred_check_branch
          %2574 = sbr.rel (%p2572) target = $region124
        $region123: #{vae_forward.1} parent=83 // pred_region
          _
        $region124: #{vae_forward.1} parent=83 // pred_fallthru
          _
      $region84: #{vae_forward.1} parent=5 // pred_fallthru
        _
      %p2575 = scmp.le.s32.totalorder 2, %s29
      // Predicated region
      $region125: #{vae_forward.1} parent=5 // pred_check
        %p2576 = pneg %p2575
      $region126: #{vae_forward.1} parent=5 // pred_check_branch
        %2578 = sbr.rel (%p2576) target = $region128
      $region127: #{vae_forward.1} parent=5 // pred_region
        %s2579 = ssub.s32 %s29, 2
        // Predicated region
        $region129: #{vae_forward.1} parent=127 // pred_check
          %p2580 = pneg %p404
        $region130: #{vae_forward.1} parent=127 // pred_check_branch
          %2582 = sbr.rel (%p2580) target = $region132
        $region131: #{vae_forward.1} parent=127 // pred_region
          %p2583 = scmp.lt.s32.totalorder %s35, 1
          %s2584 = scalar_select %p2583, %s35, 1
          %s2585 = smul.addr %s2584, 8
          %s2586 = smul.addr %s2585, 8
          %s2587 = scalar_lea.vmem %s16, %s2586
        $region132: #{vae_forward.1} parent=127 // pred_fallthru
          _
        // Predicated region
        $region133: #{vae_forward.1} parent=127 // pred_check
          %p2588 = pneg %p430
        $region134: #{vae_forward.1} parent=127 // pred_check_branch
          %2590 = sbr.rel (%p2588) target = $region136
        $region135: #{vae_forward.1} parent=127 // pred_region
          %p2591 = scmp.lt.s32.totalorder %s35, 1
          %s2592 = scalar_select %p2591, %s35, 1
          %s2593 = smul.addr %s2592, 3
          %s2594 = smul.addr %s2593, 8
          %s2595 = scalar_lea.vmem %s17, %s2594
        $region136: #{vae_forward.1} parent=127 // pred_fallthru
          _
      $region128: #{vae_forward.1} parent=5 // pred_fallthru
        _
    $region6: #{vae_forward.1} parent=1 // loop_footer
      %s33 = sadd.s32 1, %s29
    $region7: #{vae_forward.1} parent=1 // loop_footer_branch
      %28 = sbr.rel target = $region3
    $region8: #{vae_forward.1} parent=1 // loop_exit
      _
    %2596 = vsyncpa [#allocation3], 1
    %s2597 = scalar_lea.sflag [#allocation3], 1
    %2598 = vsyncpa %s2597, 1
    %2599 = vsyncpa [#allocation5], 1
    %2600 = vsyncpa [#allocation8], 1
    %2601 = vsyncpa [#allocation11], 1
    %2602 = vsyncpa [#allocation14], 1

</llo_original>
